<compile_context>
chip_gen: v5e
topology: v5e:2x2
jax: 0.10.0
libtpu: 0.0.40
codegen_flags: <defaults>
</compile_context>

<pallas_src>
import jax
import jax.numpy as jnp
import numpy as np
from jax import lax
from jax.experimental import pallas as pl
from jax.experimental.pallas import tpu as pltpu

EMBEDDING_SIZE = 200   # embedding_size in the PyTorch file
HIDDEN_SIZE = 50       # HIDDEN_SIZE in the PyTorch file
VOCAB = 100            # input_size (vocabulary) - small synthetic value
SEQ_LEN = 8            # number of word tokens in the "sentence"

E_PAD = 256            # embedding width padded to 2 lane tiles
VOCAB_PAD = 128        # embedding rows padded (layout cleanliness only)
HP = 128               # per-gate lane group (gates r | z | n)
HG = 64                # lane offset of the backward direction inside each group


def han_word_encoder_kernel(tok_ref, h0_ref, emb_ref,
                            wih_ref, gib_ref, whh_ref, bhhn_ref,
                            ww_ref, wwb_ref, uw_ref,
                            si_ref, hid_ref,
                            lhs_scr, gi_scr, outf_scr, outb_scr):
    T = lhs_scr.shape[0]
    H = HIDDEN_SIZE

    # ---- 1) Gather token embeddings from the VMEM-resident table.
    #         Row t of the combined LHS = [ emb[tok[t]] | emb[tok[T-1-t]] ]
    #         so a single matmul yields fwd gi at time t AND bwd gi at T-1-t.
    for t in range(T):
        row = emb_ref[pl.ds(tok_ref[t], 1), :]                      # (1, E_PAD)
        lhs_scr[pl.ds(t, 1), 0:E_PAD] = row
        lhs_scr[pl.ds(T - 1 - t, 1), E_PAD:2 * E_PAD] = row

    # ---- 2) Input projection for every timestep and BOTH directions in one
    #         matmul, off the serial recurrence.  Gate g of each direction
    #         lives in lanes [g*HP, g*HP+H) (fwd) / [g*HP+HG, g*HP+HG+H) (bwd).
    #         b_ih (all gates) and b_hh (r,z gates) are pre-folded into gib.
    gi_scr[...] = (jnp.dot(lhs_scr[...], wih_ref[...],
                           preferred_element_type=jnp.float32) + gib_ref[...])

    whh = whh_ref[...]      # (HP, 3*HP) interleaved recurrent weights
    bhhn = bhhn_ref[...]    # (1, HP)    b_hh of the n gate, both directions

    def step(t, h):
        # One small matmul + one set of gate ops covers both directions.
        gh = jnp.dot(h, whh, preferred_element_type=jnp.float32)    # (1, 3*HP)
        gi = gi_scr[pl.ds(t, 1), :]                                  # (1, 3*HP)
        r = jax.nn.sigmoid(gi[:, 0:HP] + gh[:, 0:HP])
        z = jax.nn.sigmoid(gi[:, HP:2 * HP] + gh[:, HP:2 * HP])
        n = jnp.tanh(gi[:, 2 * HP:3 * HP] + r * (gh[:, 2 * HP:3 * HP] + bhhn))
        h_new = (1.0 - z) * n + z * h                                # (1, HP)
        # Full-row (unmasked, lane-dense) stores; fwd half valid at time t,
        # bwd half valid at time T-1-t.  Combined lane-wise in the epilogue.
        outf_scr[pl.ds(t, 1), :] = h_new
        outb_scr[pl.ds(T - 1 - t, 1), :] = h_new
        return h_new

    h_fin = lax.fori_loop(0, T, step, h0_ref[...], unroll=True)

    hid_ref[0:1, :] = h_fin[:, 0:H]
    hid_ref[1:2, :] = h_fin[:, HG:HG + H]

    # ---- 3) Attention epilogue (off the serial chain).
    lane = lax.broadcasted_iota(jnp.int32, (T, HP), 1)
    out = jnp.where(lane < HG, outf_scr[...], outb_scr[...])        # (T, HP)
    uit = jnp.tanh(jnp.dot(out, ww_ref[...],
                           preferred_element_type=jnp.float32)
                   + wwb_ref[...])                                   # (T, HP)
    # Uw bias omitted: softmax(u + c) == softmax(u), so Si/hidden unchanged.
    # Degenerate matmuls -> VPU multiply + reductions.
    u = jnp.sum(uit * uw_ref[...], axis=1, keepdims=True)           # (T, 1)
    u_max = jnp.max(u, axis=0, keepdims=True)
    e = jnp.exp(u - u_max)
    a = e / jnp.sum(e, axis=0, keepdims=True)                       # exact divide
    si = jnp.sum(a * out, axis=0, keepdims=True)                    # (1, HP)
    si_ref[:, 0:H] = si[:, 0:H]
    si_ref[:, H:2 * H] = si[:, HG:HG + H]


def init_params(key):
    ks = jax.random.split(key, 12)
    H, E = HIDDEN_SIZE, EMBEDDING_SIZE

    def nrm(k, shape, scale):
        return (scale * jax.random.normal(k, shape)).astype(jnp.float32)

    gru_scale = 1.0 / np.sqrt(H)
    xavier_ww = np.sqrt(2.0 / (2 * H + H))
    xavier_uw = np.sqrt(2.0 / (H + 1))
    return {
        "embedding": nrm(ks[0], (VOCAB, E), 1.0),
        "w_ih_f": nrm(ks[1], (3 * H, E), gru_scale),
        "w_hh_f": nrm(ks[2], (3 * H, H), gru_scale),
        "b_ih_f": nrm(ks[3], (3 * H,), gru_scale),
        "b_hh_f": nrm(ks[4], (3 * H,), gru_scale),
        "w_ih_b": nrm(ks[5], (3 * H, E), gru_scale),
        "w_hh_b": nrm(ks[6], (3 * H, H), gru_scale),
        "b_ih_b": nrm(ks[7], (3 * H,), gru_scale),
        "b_hh_b": nrm(ks[8], (3 * H,), gru_scale),
        "ww_w": nrm(ks[9], (H, 2 * H), xavier_ww),
        "ww_b": nrm(ks[10], (H,), 0.1),
        "uw_w": nrm(ks[11], (1, H), xavier_uw),
        "uw_b": jnp.zeros((1,), jnp.float32),
    }


def prepare_params(p):
    """One-time parameter prep: transpose / pad / interleave / fuse host-side."""
    H, E = HIDDEN_SIZE, EMBEDDING_SIZE

    emb = np.zeros((VOCAB_PAD, E_PAD), np.float32)
    emb[0:VOCAB, 0:E] = np.asarray(p["embedding"])

    # Combined input projection (2*E_PAD, 3*HP): rows [0,E) carry the forward
    # weights (-> fwd lanes of each gate group), rows [E_PAD, E_PAD+E) carry
    # the backward weights (-> bwd lanes).
    wih = np.zeros((2 * E_PAD, 3 * HP), np.float32)
    wf, wb = np.asarray(p["w_ih_f"]), np.asarray(p["w_ih_b"])
    for g in range(3):
        wih[0:E, g * HP:g * HP + H] = wf[g * H:(g + 1) * H, :].T
        wih[E_PAD:E_PAD + E, g * HP + HG:g * HP + HG + H] = wb[g * H:(g + 1) * H, :].T

    # Interleaved recurrent weights (HP, 3*HP): fwd block rows [0,H), bwd block
    # rows [HG, HG+H); each writes only its own direction's lanes per gate.
    whh = np.zeros((HP, 3 * HP), np.float32)
    hf, hb = np.asarray(p["w_hh_f"]), np.asarray(p["w_hh_b"])
    for g in range(3):
        whh[0:H, g * HP:g * HP + H] = hf[g * H:(g + 1) * H, :].T
        whh[HG:HG + H, g * HP + HG:g * HP + HG + H] = hb[g * H:(g + 1) * H, :].T

    # gi bias: b_ih for all gates, plus b_hh folded in for the r and z gates.
    gib = np.zeros((1, 3 * HP), np.float32)
    bif, bhf = np.asarray(p["b_ih_f"]), np.asarray(p["b_hh_f"])
    bib, bhb = np.asarray(p["b_ih_b"]), np.asarray(p["b_hh_b"])
    for g in range(3):
        add_hh = 1.0 if g < 2 else 0.0
        gib[0, g * HP:g * HP + H] = bif[g * H:(g + 1) * H] + add_hh * bhf[g * H:(g + 1) * H]
        gib[0, g * HP + HG:g * HP + HG + H] = bib[g * H:(g + 1) * H] + add_hh * bhb[g * H:(g + 1) * H]

    # n-gate b_hh (needed separately because of the r * (W_hn h + b_hn) form).
    bhhn = np.zeros((1, HP), np.float32)
    bhhn[0, 0:H] = bhf[2 * H:3 * H]
    bhhn[0, HG:HG + H] = bhb[2 * H:3 * H]

    # Ww split/padded to match the interleaved output layout.
    ww = np.asarray(p["ww_w"])                               # (H, 2H)
    ww_pad = np.zeros((HP, HP), np.float32)
    ww_pad[0:H, 0:H] = ww[:, 0:H].T
    ww_pad[HG:HG + H, 0:H] = ww[:, H:2 * H].T
    wwb = np.zeros((1, HP), np.float32)
    wwb[0, 0:H] = np.asarray(p["ww_b"])

    uw = np.zeros((1, HP), np.float32)
    uw[0, 0:H] = np.asarray(p["uw_w"])[0, :]
    # Uw bias intentionally dropped: softmax(u + c) == softmax(u).

    # One-time check of the load-bearing "pad lanes are exactly zero" invariant.
    pad = np.ones(HP, bool)
    pad[0:H] = False
    pad[HG:HG + H] = False
    gate_pad = np.tile(pad, 3)
    assert np.all(wih[:, gate_pad] == 0.0)
    assert np.all(whh[:, gate_pad] == 0.0) and np.all(whh[pad, :] == 0.0)
    assert np.all(gib[0, gate_pad] == 0.0) and np.all(bhhn[0, pad] == 0.0)
    assert np.all(ww_pad[pad, :] == 0.0) and np.all(uw[0, H:] == 0.0)

    return {k: jnp.asarray(v) for k, v in dict(
        embedding=emb, wih=wih, gib=gib, whh=whh, bhhn=bhhn,
        ww=ww_pad, wwb=wwb, uw=uw).items()}


@jax.jit
def han_word_encoder(tokens, hidden, prepped):
    """tokens: (T, 1) int32, hidden: (2, 1, H) f32 -> (Si (1, 2H), hidden (2, 1, H))."""
    T = tokens.shape[0]
    H = HIDDEN_SIZE

    tok1d = tokens[:, 0].astype(jnp.int32)                    # (T,) -> SMEM

    # Padded initial hidden built in XLA (overlaps the weight copy-ins):
    # fwd in lanes [0, H), bwd in lanes [HG, HG+H), pad lanes exactly zero.
    h0 = jnp.zeros((1, HP), jnp.float32)
    h0 = h0.at[0, 0:H].set(hidden[0, 0, :]).at[0, HG:HG + H].set(hidden[1, 0, :])

    vmem = pl.BlockSpec(memory_space=pltpu.MemorySpace.VMEM)
    smem = pl.BlockSpec(memory_space=pltpu.MemorySpace.SMEM)
    si, hid = pl.pallas_call(
        han_word_encoder_kernel,
        out_shape=(
            jax.ShapeDtypeStruct((1, 2 * H), jnp.float32),
            jax.ShapeDtypeStruct((2, H), jnp.float32),
        ),
        in_specs=[
            smem,   # token ids (T,)
            vmem,   # padded initial hidden (1, HP)
            vmem,   # embedding table (VOCAB_PAD, E_PAD) — 128 KB, VMEM resident
            vmem,   # wih  (2*E_PAD, 3*HP)
            vmem,   # gi bias (1, 3*HP)
            vmem,   # whh (HP, 3*HP)
            vmem,   # b_hh n-gate (1, HP)
            vmem,   # ww (HP, HP)
            vmem,   # ww bias (1, HP)
            vmem,   # uw (1, HP)
        ],
        out_specs=(vmem, vmem),
        scratch_shapes=[
            pltpu.VMEM((T, 2 * E_PAD), jnp.float32),   # gathered [emb[t] | emb[T-1-t]]
            pltpu.VMEM((T, 3 * HP), jnp.float32),      # precomputed input projections
            pltpu.VMEM((T, HP), jnp.float32),          # per-step state, fwd time order
            pltpu.VMEM((T, HP), jnp.float32),          # per-step state, bwd time order
        ],
    )(tok1d, h0, prepped["embedding"], prepped["wih"], prepped["gib"],
      prepped["whh"], prepped["bhhn"], prepped["ww"], prepped["wwb"],
      prepped["uw"])

    return si, hid[:, None, :]                         # Si (1, 2H), hidden (2, 1, H)


def ref_forward(tokens, hidden, p):
    """Pure-JAX reference matching the PyTorch forward semantics."""
    H = HIDDEN_SIZE
    emb = p["embedding"][tokens[:, 0]]                 # (T, E)

    def make_step(wih, whh, bih, bhh):
        def step(h, x):
            gi = wih @ x + bih
            gh = whh @ h + bhh
            r = jax.nn.sigmoid(gi[0:H] + gh[0:H])
            z = jax.nn.sigmoid(gi[H:2 * H] + gh[H:2 * H])
            n = jnp.tanh(gi[2 * H:] + r * gh[2 * H:])
            h_new = (1.0 - z) * n + z * h
            return h_new, h_new
        return step

    h_f_last, out_f = lax.scan(
        make_step(p["w_ih_f"], p["w_hh_f"], p["b_ih_f"], p["b_hh_f"]),
        hidden[0, 0], emb)
    h_b_last, out_b_rev = lax.scan(
        make_step(p["w_ih_b"], p["w_hh_b"], p["b_ih_b"], p["b_hh_b"]),
        hidden[1, 0], emb[::-1])
    out_b = out_b_rev[::-1]
    out = jnp.concatenate([out_f, out_b], axis=-1)     # (T, 2H)

    uit = jnp.tanh(out @ p["ww_w"].T + p["ww_b"])
    u = (uit @ p["uw_w"].T + p["uw_b"])[:, 0]          # (T,)
    a = jax.nn.softmax(u, axis=0)
    si = jnp.sum(a[:, None] * out, axis=0, keepdims=True)
    hid = jnp.stack([h_f_last, h_b_last])[:, None, :]
    return si, hid


if __name__ == "__main__":
    key = jax.random.PRNGKey(0)
    k_param, k_tok = jax.random.split(key)

    params = init_params(k_param)
    prepped = prepare_params(params)                   # one-time parameter prep

    tokens = jax.random.randint(k_tok, (SEQ_LEN, 1), 0, VOCAB, dtype=jnp.int32)
    hidden0 = jnp.zeros((2, 1, HIDDEN_SIZE), jnp.float32)   # module.initHidden()

    si, hid = han_word_encoder(tokens, hidden0, prepped)
    jax.block_until_ready((si, hid))

    si_exp, hid_exp = ref_forward(tokens, hidden0, params)
    # hidden is the exact f32 recurrence output -> tight tolerance.
    np.testing.assert_allclose(np.asarray(hid), np.asarray(hid_exp),
                               atol=1e-5, rtol=1e-5)
    # Si uses an exact softmax divide now -> tolerance tightened 5e-3 -> 1e-4.
    np.testing.assert_allclose(np.asarray(si), np.asarray(si_exp),
                               atol=1e-4, rtol=1e-4)

    assert si.shape == (1, 2 * HIDDEN_SIZE) and hid.shape == (2, 1, HIDDEN_SIZE)
    print("KERNEL_OK")
</pallas_src>

<mosaic_0001>
module attributes {stable_mosaic.version = 11 : i64} {
  func.func @han_word_encoder_kernel(%arg0: memref<8xi32, #tpu.memory_space<smem>>, %arg1: memref<1x128xf32, #tpu.memory_space<vmem>>, %arg2: memref<128x256xf32, #tpu.memory_space<vmem>>, %arg3: memref<512x384xf32, #tpu.memory_space<vmem>>, %arg4: memref<1x384xf32, #tpu.memory_space<vmem>>, %arg5: memref<128x384xf32, #tpu.memory_space<vmem>>, %arg6: memref<1x128xf32, #tpu.memory_space<vmem>>, %arg7: memref<128x128xf32, #tpu.memory_space<vmem>>, %arg8: memref<1x128xf32, #tpu.memory_space<vmem>>, %arg9: memref<1x128xf32, #tpu.memory_space<vmem>>, %arg10: memref<1x100xf32, #tpu.memory_space<vmem>>, %arg11: memref<2x50xf32, #tpu.memory_space<vmem>>, %arg12: memref<8x512xf32, #tpu.memory_space<vmem>>, %arg13: memref<8x384xf32, #tpu.memory_space<vmem>>, %arg14: memref<8x128xf32, #tpu.memory_space<vmem>>, %arg15: memref<8x128xf32, #tpu.memory_space<vmem>>) attributes {dimension_semantics = [], scalar_prefetch = 0 : i64, scratch_operands = 4 : i64, tpu.core_type = #tpu.core_type<tc>} {
    %c0 = arith.constant 0 : index
    %0 = memref.load %arg0[%c0] : memref<8xi32, #tpu.memory_space<smem>>
    %1 = arith.index_cast %0 : i32 to index
    %c0_0 = arith.constant 0 : index
    %2 = vector.load %arg2[%1, %c0_0] : memref<128x256xf32, #tpu.memory_space<vmem>>, vector<1x256xf32>
    %c0_1 = arith.constant 0 : index
    %c0_2 = arith.constant 0 : index
    %3 = vector.load %arg12[%c0_1, %c0_2] : memref<8x512xf32, #tpu.memory_space<vmem>>, vector<1x256xf32>
    tpu.vector_store %arg12[%c0_1, %c0_2], %2 {strides = array<i32>} : memref<8x512xf32, #tpu.memory_space<vmem>>, vector<1x256xf32>,
    %c7 = arith.constant 7 : index
    %c256 = arith.constant 256 : index
    %4 = vector.load %arg12[%c7, %c256] : memref<8x512xf32, #tpu.memory_space<vmem>>, vector<1x256xf32>
    tpu.vector_store %arg12[%c7, %c256], %2 {strides = array<i32>} : memref<8x512xf32, #tpu.memory_space<vmem>>, vector<1x256xf32>,
    %c1 = arith.constant 1 : index
    %5 = memref.load %arg0[%c1] : memref<8xi32, #tpu.memory_space<smem>>
    %6 = arith.index_cast %5 : i32 to index
    %c0_3 = arith.constant 0 : index
    %7 = vector.load %arg2[%6, %c0_3] : memref<128x256xf32, #tpu.memory_space<vmem>>, vector<1x256xf32>
    %c1_4 = arith.constant 1 : index
    %c0_5 = arith.constant 0 : index
    %8 = vector.load %arg12[%c1_4, %c0_5] : memref<8x512xf32, #tpu.memory_space<vmem>>, vector<1x256xf32>
    tpu.vector_store %arg12[%c1_4, %c0_5], %7 {strides = array<i32>} : memref<8x512xf32, #tpu.memory_space<vmem>>, vector<1x256xf32>,
    %c6 = arith.constant 6 : index
    %c256_6 = arith.constant 256 : index
    %9 = vector.load %arg12[%c6, %c256_6] : memref<8x512xf32, #tpu.memory_space<vmem>>, vector<1x256xf32>
    tpu.vector_store %arg12[%c6, %c256_6], %7 {strides = array<i32>} : memref<8x512xf32, #tpu.memory_space<vmem>>, vector<1x256xf32>,
    %c2 = arith.constant 2 : index
    %10 = memref.load %arg0[%c2] : memref<8xi32, #tpu.memory_space<smem>>
    %11 = arith.index_cast %10 : i32 to index
    %c0_7 = arith.constant 0 : index
    %12 = vector.load %arg2[%11, %c0_7] : memref<128x256xf32, #tpu.memory_space<vmem>>, vector<1x256xf32>
    %c2_8 = arith.constant 2 : index
    %c0_9 = arith.constant 0 : index
    %13 = vector.load %arg12[%c2_8, %c0_9] : memref<8x512xf32, #tpu.memory_space<vmem>>, vector<1x256xf32>
    tpu.vector_store %arg12[%c2_8, %c0_9], %12 {strides = array<i32>} : memref<8x512xf32, #tpu.memory_space<vmem>>, vector<1x256xf32>,
    %c5 = arith.constant 5 : index
    %c256_10 = arith.constant 256 : index
    %14 = vector.load %arg12[%c5, %c256_10] : memref<8x512xf32, #tpu.memory_space<vmem>>, vector<1x256xf32>
    tpu.vector_store %arg12[%c5, %c256_10], %12 {strides = array<i32>} : memref<8x512xf32, #tpu.memory_space<vmem>>, vector<1x256xf32>,
    %c3 = arith.constant 3 : index
    %15 = memref.load %arg0[%c3] : memref<8xi32, #tpu.memory_space<smem>>
    %16 = arith.index_cast %15 : i32 to index
    %c0_11 = arith.constant 0 : index
    %17 = vector.load %arg2[%16, %c0_11] : memref<128x256xf32, #tpu.memory_space<vmem>>, vector<1x256xf32>
    %c3_12 = arith.constant 3 : index
    %c0_13 = arith.constant 0 : index
    %18 = vector.load %arg12[%c3_12, %c0_13] : memref<8x512xf32, #tpu.memory_space<vmem>>, vector<1x256xf32>
    tpu.vector_store %arg12[%c3_12, %c0_13], %17 {strides = array<i32>} : memref<8x512xf32, #tpu.memory_space<vmem>>, vector<1x256xf32>,
    %c4 = arith.constant 4 : index
    %c256_14 = arith.constant 256 : index
    %19 = vector.load %arg12[%c4, %c256_14] : memref<8x512xf32, #tpu.memory_space<vmem>>, vector<1x256xf32>
    tpu.vector_store %arg12[%c4, %c256_14], %17 {strides = array<i32>} : memref<8x512xf32, #tpu.memory_space<vmem>>, vector<1x256xf32>,
    %c4_15 = arith.constant 4 : index
    %20 = memref.load %arg0[%c4_15] : memref<8xi32, #tpu.memory_space<smem>>
    %21 = arith.index_cast %20 : i32 to index
    %c0_16 = arith.constant 0 : index
    %22 = vector.load %arg2[%21, %c0_16] : memref<128x256xf32, #tpu.memory_space<vmem>>, vector<1x256xf32>
    %c4_17 = arith.constant 4 : index
    %c0_18 = arith.constant 0 : index
    %23 = vector.load %arg12[%c4_17, %c0_18] : memref<8x512xf32, #tpu.memory_space<vmem>>, vector<1x256xf32>
    tpu.vector_store %arg12[%c4_17, %c0_18], %22 {strides = array<i32>} : memref<8x512xf32, #tpu.memory_space<vmem>>, vector<1x256xf32>,
    %c3_19 = arith.constant 3 : index
    %c256_20 = arith.constant 256 : index
    %24 = vector.load %arg12[%c3_19, %c256_20] : memref<8x512xf32, #tpu.memory_space<vmem>>, vector<1x256xf32>
    tpu.vector_store %arg12[%c3_19, %c256_20], %22 {strides = array<i32>} : memref<8x512xf32, #tpu.memory_space<vmem>>, vector<1x256xf32>,
    %c5_21 = arith.constant 5 : index
    %25 = memref.load %arg0[%c5_21] : memref<8xi32, #tpu.memory_space<smem>>
    %26 = arith.index_cast %25 : i32 to index
    %c0_22 = arith.constant 0 : index
    %27 = vector.load %arg2[%26, %c0_22] : memref<128x256xf32, #tpu.memory_space<vmem>>, vector<1x256xf32>
    %c5_23 = arith.constant 5 : index
    %c0_24 = arith.constant 0 : index
    %28 = vector.load %arg12[%c5_23, %c0_24] : memref<8x512xf32, #tpu.memory_space<vmem>>, vector<1x256xf32>
    tpu.vector_store %arg12[%c5_23, %c0_24], %27 {strides = array<i32>} : memref<8x512xf32, #tpu.memory_space<vmem>>, vector<1x256xf32>,
    %c2_25 = arith.constant 2 : index
    %c256_26 = arith.constant 256 : index
    %29 = vector.load %arg12[%c2_25, %c256_26] : memref<8x512xf32, #tpu.memory_space<vmem>>, vector<1x256xf32>
    tpu.vector_store %arg12[%c2_25, %c256_26], %27 {strides = array<i32>} : memref<8x512xf32, #tpu.memory_space<vmem>>, vector<1x256xf32>,
    %c6_27 = arith.constant 6 : index
    %30 = memref.load %arg0[%c6_27] : memref<8xi32, #tpu.memory_space<smem>>
    %31 = arith.index_cast %30 : i32 to index
    %c0_28 = arith.constant 0 : index
    %32 = vector.load %arg2[%31, %c0_28] : memref<128x256xf32, #tpu.memory_space<vmem>>, vector<1x256xf32>
    %c6_29 = arith.constant 6 : index
    %c0_30 = arith.constant 0 : index
    %33 = vector.load %arg12[%c6_29, %c0_30] : memref<8x512xf32, #tpu.memory_space<vmem>>, vector<1x256xf32>
    tpu.vector_store %arg12[%c6_29, %c0_30], %32 {strides = array<i32>} : memref<8x512xf32, #tpu.memory_space<vmem>>, vector<1x256xf32>,
    %c1_31 = arith.constant 1 : index
    %c256_32 = arith.constant 256 : index
    %34 = vector.load %arg12[%c1_31, %c256_32] : memref<8x512xf32, #tpu.memory_space<vmem>>, vector<1x256xf32>
    tpu.vector_store %arg12[%c1_31, %c256_32], %32 {strides = array<i32>} : memref<8x512xf32, #tpu.memory_space<vmem>>, vector<1x256xf32>,
    %c7_33 = arith.constant 7 : index
    %35 = memref.load %arg0[%c7_33] : memref<8xi32, #tpu.memory_space<smem>>
    %36 = arith.index_cast %35 : i32 to index
    %c0_34 = arith.constant 0 : index
    %37 = vector.load %arg2[%36, %c0_34] : memref<128x256xf32, #tpu.memory_space<vmem>>, vector<1x256xf32>
    %c7_35 = arith.constant 7 : index
    %c0_36 = arith.constant 0 : index
    %38 = vector.load %arg12[%c7_35, %c0_36] : memref<8x512xf32, #tpu.memory_space<vmem>>, vector<1x256xf32>
    tpu.vector_store %arg12[%c7_35, %c0_36], %37 {strides = array<i32>} : memref<8x512xf32, #tpu.memory_space<vmem>>, vector<1x256xf32>,
    %c0_37 = arith.constant 0 : index
    %c256_38 = arith.constant 256 : index
    %39 = vector.load %arg12[%c0_37, %c256_38] : memref<8x512xf32, #tpu.memory_space<vmem>>, vector<1x256xf32>
    tpu.vector_store %arg12[%c0_37, %c256_38], %37 {strides = array<i32>} : memref<8x512xf32, #tpu.memory_space<vmem>>, vector<1x256xf32>,
    %c0_39 = arith.constant 0 : index
    %c0_40 = arith.constant 0 : index
    %40 = vector.load %arg12[%c0_39, %c0_40] : memref<8x512xf32, #tpu.memory_space<vmem>>, vector<8x512xf32>
    %c0_41 = arith.constant 0 : index
    %c0_42 = arith.constant 0 : index
    %41 = vector.load %arg3[%c0_41, %c0_42] : memref<512x384xf32, #tpu.memory_space<vmem>>, vector<512x384xf32>
    %cst = arith.constant dense<0.000000e+00> : vector<8x384xf32>
    %42 = tpu.matmul %40, %41, %cst {dimension_numbers = #tpu.dot_dimension_numbers<[1], [0], [0], [1], [0, 0, 1, 1], [], []>} : vector<8x512xf32>, vector<512x384xf32>, vector<8x384xf32> -> vector<8x384xf32>
    %c0_43 = arith.constant 0 : index
    %c0_44 = arith.constant 0 : index
    %43 = vector.load %arg4[%c0_43, %c0_44] : memref<1x384xf32, #tpu.memory_space<vmem>>, vector<1x384xf32>
    %44 = vector.broadcast %43 : vector<1x384xf32> to vector<8x384xf32>
    %45 = arith.addf %42, %44 : vector<8x384xf32>
    %c0_45 = arith.constant 0 : index
    %c0_46 = arith.constant 0 : index
    %46 = vector.load %arg13[%c0_45, %c0_46] : memref<8x384xf32, #tpu.memory_space<vmem>>, vector<8x384xf32>
    tpu.vector_store %arg13[%c0_45, %c0_46], %45 {strides = array<i32>} : memref<8x384xf32, #tpu.memory_space<vmem>>, vector<8x384xf32>,
    %c0_47 = arith.constant 0 : index
    %c0_48 = arith.constant 0 : index
    %47 = vector.load %arg5[%c0_47, %c0_48] : memref<128x384xf32, #tpu.memory_space<vmem>>, vector<128x384xf32>
    %c0_49 = arith.constant 0 : index
    %c0_50 = arith.constant 0 : index
    %48 = vector.load %arg6[%c0_49, %c0_50] : memref<1x128xf32, #tpu.memory_space<vmem>>, vector<1x128xf32>
    %c0_51 = arith.constant 0 : index
    %c0_52 = arith.constant 0 : index
    %49 = vector.load %arg1[%c0_51, %c0_52] : memref<1x128xf32, #tpu.memory_space<vmem>>, vector<1x128xf32>
    %c0_i32 = arith.constant 0 : i32
    %cst_53 = arith.constant dense<0.000000e+00> : vector<1x384xf32>
    %50 = tpu.matmul %49, %47, %cst_53 {dimension_numbers = #tpu.dot_dimension_numbers<[1], [0], [0], [1], [0, 0, 1, 1], [], []>} : vector<1x128xf32>, vector<128x384xf32>, vector<1x384xf32> -> vector<1x384xf32>
    %51 = arith.index_cast %c0_i32 : i32 to index
    %c0_54 = arith.constant 0 : index
    %52 = vector.load %arg13[%51, %c0_54] : memref<8x384xf32, #tpu.memory_space<vmem>>, vector<1x384xf32>
    %53 = vector.extract_strided_slice %52 {offsets = [0, 0], sizes = [1, 128], strides = [1, 1]} : vector<1x384xf32> to vector<1x128xf32>
    %54 = vector.extract_strided_slice %50 {offsets = [0, 0], sizes = [1, 128], strides = [1, 1]} : vector<1x384xf32> to vector<1x128xf32>
    %55 = arith.addf %53, %54 : vector<1x128xf32>
    %56 = arith.negf %55 : vector<1x128xf32>
    %57 = math.exp %56 : vector<1x128xf32>
    %cst_55 = arith.constant 1.000000e+00 : f32
    %58 = vector.broadcast %cst_55 : f32 to vector<1x128xf32>
    %59 = arith.addf %58, %57 : vector<1x128xf32>
    %60 = arith.divf %58, %59 : vector<1x128xf32>
    %61 = vector.extract_strided_slice %52 {offsets = [0, 128], sizes = [1, 128], strides = [1, 1]} : vector<1x384xf32> to vector<1x128xf32>
    %62 = vector.extract_strided_slice %50 {offsets = [0, 128], sizes = [1, 128], strides = [1, 1]} : vector<1x384xf32> to vector<1x128xf32>
    %63 = arith.addf %61, %62 : vector<1x128xf32>
    %64 = arith.negf %63 : vector<1x128xf32>
    %65 = math.exp %64 : vector<1x128xf32>
    %cst_56 = arith.constant 1.000000e+00 : f32
    %66 = vector.broadcast %cst_56 : f32 to vector<1x128xf32>
    %67 = arith.addf %66, %65 : vector<1x128xf32>
    %68 = arith.divf %66, %67 : vector<1x128xf32>
    %69 = vector.extract_strided_slice %52 {offsets = [0, 256], sizes = [1, 128], strides = [1, 1]} : vector<1x384xf32> to vector<1x128xf32>
    %70 = vector.extract_strided_slice %50 {offsets = [0, 256], sizes = [1, 128], strides = [1, 1]} : vector<1x384xf32> to vector<1x128xf32>
    %71 = arith.addf %70, %48 : vector<1x128xf32>
    %72 = arith.mulf %60, %71 : vector<1x128xf32>
    %73 = arith.addf %69, %72 : vector<1x128xf32>
    %74 = math.tanh %73 : vector<1x128xf32>
    %cst_57 = arith.constant 1.000000e+00 : f32
    %75 = vector.broadcast %cst_57 : f32 to vector<1x128xf32>
    %76 = arith.subf %75, %68 : vector<1x128xf32>
    %77 = arith.mulf %76, %74 : vector<1x128xf32>
    %78 = arith.mulf %68, %49 : vector<1x128xf32>
    %79 = arith.addf %77, %78 : vector<1x128xf32>
    %80 = arith.index_cast %c0_i32 : i32 to index
    %c0_58 = arith.constant 0 : index
    %81 = vector.load %arg14[%80, %c0_58] : memref<8x128xf32, #tpu.memory_space<vmem>>, vector<1x128xf32>
    tpu.vector_store %arg14[%80, %c0_58], %79 {strides = array<i32>} : memref<8x128xf32, #tpu.memory_space<vmem>>, vector<1x128xf32>,
    %c7_i32 = arith.constant 7 : i32
    %82 = arith.subi %c7_i32, %c0_i32 : i32
    %83 = arith.index_cast %82 : i32 to index
    %c0_59 = arith.constant 0 : index
    %84 = vector.load %arg15[%83, %c0_59] : memref<8x128xf32, #tpu.memory_space<vmem>>, vector<1x128xf32>
    tpu.vector_store %arg15[%83, %c0_59], %79 {strides = array<i32>} : memref<8x128xf32, #tpu.memory_space<vmem>>, vector<1x128xf32>,
    %c1_i32 = arith.constant 1 : i32
    %cst_60 = arith.constant dense<0.000000e+00> : vector<1x384xf32>
    %85 = tpu.matmul %79, %47, %cst_60 {dimension_numbers = #tpu.dot_dimension_numbers<[1], [0], [0], [1], [0, 0, 1, 1], [], []>} : vector<1x128xf32>, vector<128x384xf32>, vector<1x384xf32> -> vector<1x384xf32>
    %86 = arith.index_cast %c1_i32 : i32 to index
    %c0_61 = arith.constant 0 : index
    %87 = vector.load %arg13[%86, %c0_61] : memref<8x384xf32, #tpu.memory_space<vmem>>, vector<1x384xf32>
    %88 = vector.extract_strided_slice %87 {offsets = [0, 0], sizes = [1, 128], strides = [1, 1]} : vector<1x384xf32> to vector<1x128xf32>
    %89 = vector.extract_strided_slice %85 {offsets = [0, 0], sizes = [1, 128], strides = [1, 1]} : vector<1x384xf32> to vector<1x128xf32>
    %90 = arith.addf %88, %89 : vector<1x128xf32>
    %91 = arith.negf %90 : vector<1x128xf32>
    %92 = math.exp %91 : vector<1x128xf32>
    %cst_62 = arith.constant 1.000000e+00 : f32
    %93 = vector.broadcast %cst_62 : f32 to vector<1x128xf32>
    %94 = arith.addf %93, %92 : vector<1x128xf32>
    %95 = arith.divf %93, %94 : vector<1x128xf32>
    %96 = vector.extract_strided_slice %87 {offsets = [0, 128], sizes = [1, 128], strides = [1, 1]} : vector<1x384xf32> to vector<1x128xf32>
    %97 = vector.extract_strided_slice %85 {offsets = [0, 128], sizes = [1, 128], strides = [1, 1]} : vector<1x384xf32> to vector<1x128xf32>
    %98 = arith.addf %96, %97 : vector<1x128xf32>
    %99 = arith.negf %98 : vector<1x128xf32>
    %100 = math.exp %99 : vector<1x128xf32>
    %cst_63 = arith.constant 1.000000e+00 : f32
    %101 = vector.broadcast %cst_63 : f32 to vector<1x128xf32>
    %102 = arith.addf %101, %100 : vector<1x128xf32>
    %103 = arith.divf %101, %102 : vector<1x128xf32>
    %104 = vector.extract_strided_slice %87 {offsets = [0, 256], sizes = [1, 128], strides = [1, 1]} : vector<1x384xf32> to vector<1x128xf32>
    %105 = vector.extract_strided_slice %85 {offsets = [0, 256], sizes = [1, 128], strides = [1, 1]} : vector<1x384xf32> to vector<1x128xf32>
    %106 = arith.addf %105, %48 : vector<1x128xf32>
    %107 = arith.mulf %95, %106 : vector<1x128xf32>
    %108 = arith.addf %104, %107 : vector<1x128xf32>
    %109 = math.tanh %108 : vector<1x128xf32>
    %cst_64 = arith.constant 1.000000e+00 : f32
    %110 = vector.broadcast %cst_64 : f32 to vector<1x128xf32>
    %111 = arith.subf %110, %103 : vector<1x128xf32>
    %112 = arith.mulf %111, %109 : vector<1x128xf32>
    %113 = arith.mulf %103, %79 : vector<1x128xf32>
    %114 = arith.addf %112, %113 : vector<1x128xf32>
    %115 = arith.index_cast %c1_i32 : i32 to index
    %c0_65 = arith.constant 0 : index
    %116 = vector.load %arg14[%115, %c0_65] : memref<8x128xf32, #tpu.memory_space<vmem>>, vector<1x128xf32>
    tpu.vector_store %arg14[%115, %c0_65], %114 {strides = array<i32>} : memref<8x128xf32, #tpu.memory_space<vmem>>, vector<1x128xf32>,
    %c7_i32_66 = arith.constant 7 : i32
    %117 = arith.subi %c7_i32_66, %c1_i32 : i32
    %118 = arith.index_cast %117 : i32 to index
    %c0_67 = arith.constant 0 : index
    %119 = vector.load %arg15[%118, %c0_67] : memref<8x128xf32, #tpu.memory_space<vmem>>, vector<1x128xf32>
    tpu.vector_store %arg15[%118, %c0_67], %114 {strides = array<i32>} : memref<8x128xf32, #tpu.memory_space<vmem>>, vector<1x128xf32>,
    %c2_i32 = arith.constant 2 : i32
    %cst_68 = arith.constant dense<0.000000e+00> : vector<1x384xf32>
    %120 = tpu.matmul %114, %47, %cst_68 {dimension_numbers = #tpu.dot_dimension_numbers<[1], [0], [0], [1], [0, 0, 1, 1], [], []>} : vector<1x128xf32>, vector<128x384xf32>, vector<1x384xf32> -> vector<1x384xf32>
    %121 = arith.index_cast %c2_i32 : i32 to index
    %c0_69 = arith.constant 0 : index
    %122 = vector.load %arg13[%121, %c0_69] : memref<8x384xf32, #tpu.memory_space<vmem>>, vector<1x384xf32>
    %123 = vector.extract_strided_slice %122 {offsets = [0, 0], sizes = [1, 128], strides = [1, 1]} : vector<1x384xf32> to vector<1x128xf32>
    %124 = vector.extract_strided_slice %120 {offsets = [0, 0], sizes = [1, 128], strides = [1, 1]} : vector<1x384xf32> to vector<1x128xf32>
    %125 = arith.addf %123, %124 : vector<1x128xf32>
    %126 = arith.negf %125 : vector<1x128xf32>
    %127 = math.exp %126 : vector<1x128xf32>
    %cst_70 = arith.constant 1.000000e+00 : f32
    %128 = vector.broadcast %cst_70 : f32 to vector<1x128xf32>
    %129 = arith.addf %128, %127 : vector<1x128xf32>
    %130 = arith.divf %128, %129 : vector<1x128xf32>
    %131 = vector.extract_strided_slice %122 {offsets = [0, 128], sizes = [1, 128], strides = [1, 1]} : vector<1x384xf32> to vector<1x128xf32>
    %132 = vector.extract_strided_slice %120 {offsets = [0, 128], sizes = [1, 128], strides = [1, 1]} : vector<1x384xf32> to vector<1x128xf32>
    %133 = arith.addf %131, %132 : vector<1x128xf32>
    %134 = arith.negf %133 : vector<1x128xf32>
    %135 = math.exp %134 : vector<1x128xf32>
    %cst_71 = arith.constant 1.000000e+00 : f32
    %136 = vector.broadcast %cst_71 : f32 to vector<1x128xf32>
    %137 = arith.addf %136, %135 : vector<1x128xf32>
    %138 = arith.divf %136, %137 : vector<1x128xf32>
    %139 = vector.extract_strided_slice %122 {offsets = [0, 256], sizes = [1, 128], strides = [1, 1]} : vector<1x384xf32> to vector<1x128xf32>
    %140 = vector.extract_strided_slice %120 {offsets = [0, 256], sizes = [1, 128], strides = [1, 1]} : vector<1x384xf32> to vector<1x128xf32>
    %141 = arith.addf %140, %48 : vector<1x128xf32>
    %142 = arith.mulf %130, %141 : vector<1x128xf32>
    %143 = arith.addf %139, %142 : vector<1x128xf32>
    %144 = math.tanh %143 : vector<1x128xf32>
    %cst_72 = arith.constant 1.000000e+00 : f32
    %145 = vector.broadcast %cst_72 : f32 to vector<1x128xf32>
    %146 = arith.subf %145, %138 : vector<1x128xf32>
    %147 = arith.mulf %146, %144 : vector<1x128xf32>
    %148 = arith.mulf %138, %114 : vector<1x128xf32>
    %149 = arith.addf %147, %148 : vector<1x128xf32>
    %150 = arith.index_cast %c2_i32 : i32 to index
    %c0_73 = arith.constant 0 : index
    %151 = vector.load %arg14[%150, %c0_73] : memref<8x128xf32, #tpu.memory_space<vmem>>, vector<1x128xf32>
    tpu.vector_store %arg14[%150, %c0_73], %149 {strides = array<i32>} : memref<8x128xf32, #tpu.memory_space<vmem>>, vector<1x128xf32>,
    %c7_i32_74 = arith.constant 7 : i32
    %152 = arith.subi %c7_i32_74, %c2_i32 : i32
    %153 = arith.index_cast %152 : i32 to index
    %c0_75 = arith.constant 0 : index
    %154 = vector.load %arg15[%153, %c0_75] : memref<8x128xf32, #tpu.memory_space<vmem>>, vector<1x128xf32>
    tpu.vector_store %arg15[%153, %c0_75], %149 {strides = array<i32>} : memref<8x128xf32, #tpu.memory_space<vmem>>, vector<1x128xf32>,
    %c3_i32 = arith.constant 3 : i32
    %cst_76 = arith.constant dense<0.000000e+00> : vector<1x384xf32>
    %155 = tpu.matmul %149, %47, %cst_76 {dimension_numbers = #tpu.dot_dimension_numbers<[1], [0], [0], [1], [0, 0, 1, 1], [], []>} : vector<1x128xf32>, vector<128x384xf32>, vector<1x384xf32> -> vector<1x384xf32>
    %156 = arith.index_cast %c3_i32 : i32 to index
    %c0_77 = arith.constant 0 : index
    %157 = vector.load %arg13[%156, %c0_77] : memref<8x384xf32, #tpu.memory_space<vmem>>, vector<1x384xf32>
    %158 = vector.extract_strided_slice %157 {offsets = [0, 0], sizes = [1, 128], strides = [1, 1]} : vector<1x384xf32> to vector<1x128xf32>
    %159 = vector.extract_strided_slice %155 {offsets = [0, 0], sizes = [1, 128], strides = [1, 1]} : vector<1x384xf32> to vector<1x128xf32>
    %160 = arith.addf %158, %159 : vector<1x128xf32>
    %161 = arith.negf %160 : vector<1x128xf32>
    %162 = math.exp %161 : vector<1x128xf32>
    %cst_78 = arith.constant 1.000000e+00 : f32
    %163 = vector.broadcast %cst_78 : f32 to vector<1x128xf32>
    %164 = arith.addf %163, %162 : vector<1x128xf32>
    %165 = arith.divf %163, %164 : vector<1x128xf32>
    %166 = vector.extract_strided_slice %157 {offsets = [0, 128], sizes = [1, 128], strides = [1, 1]} : vector<1x384xf32> to vector<1x128xf32>
    %167 = vector.extract_strided_slice %155 {offsets = [0, 128], sizes = [1, 128], strides = [1, 1]} : vector<1x384xf32> to vector<1x128xf32>
    %168 = arith.addf %166, %167 : vector<1x128xf32>
    %169 = arith.negf %168 : vector<1x128xf32>
    %170 = math.exp %169 : vector<1x128xf32>
    %cst_79 = arith.constant 1.000000e+00 : f32
    %171 = vector.broadcast %cst_79 : f32 to vector<1x128xf32>
    %172 = arith.addf %171, %170 : vector<1x128xf32>
    %173 = arith.divf %171, %172 : vector<1x128xf32>
    %174 = vector.extract_strided_slice %157 {offsets = [0, 256], sizes = [1, 128], strides = [1, 1]} : vector<1x384xf32> to vector<1x128xf32>
    %175 = vector.extract_strided_slice %155 {offsets = [0, 256], sizes = [1, 128], strides = [1, 1]} : vector<1x384xf32> to vector<1x128xf32>
    %176 = arith.addf %175, %48 : vector<1x128xf32>
    %177 = arith.mulf %165, %176 : vector<1x128xf32>
    %178 = arith.addf %174, %177 : vector<1x128xf32>
    %179 = math.tanh %178 : vector<1x128xf32>
    %cst_80 = arith.constant 1.000000e+00 : f32
    %180 = vector.broadcast %cst_80 : f32 to vector<1x128xf32>
    %181 = arith.subf %180, %173 : vector<1x128xf32>
    %182 = arith.mulf %181, %179 : vector<1x128xf32>
    %183 = arith.mulf %173, %149 : vector<1x128xf32>
    %184 = arith.addf %182, %183 : vector<1x128xf32>
    %185 = arith.index_cast %c3_i32 : i32 to index
    %c0_81 = arith.constant 0 : index
    %186 = vector.load %arg14[%185, %c0_81] : memref<8x128xf32, #tpu.memory_space<vmem>>, vector<1x128xf32>
    tpu.vector_store %arg14[%185, %c0_81], %184 {strides = array<i32>} : memref<8x128xf32, #tpu.memory_space<vmem>>, vector<1x128xf32>,
    %c7_i32_82 = arith.constant 7 : i32
    %187 = arith.subi %c7_i32_82, %c3_i32 : i32
    %188 = arith.index_cast %187 : i32 to index
    %c0_83 = arith.constant 0 : index
    %189 = vector.load %arg15[%188, %c0_83] : memref<8x128xf32, #tpu.memory_space<vmem>>, vector<1x128xf32>
    tpu.vector_store %arg15[%188, %c0_83], %184 {strides = array<i32>} : memref<8x128xf32, #tpu.memory_space<vmem>>, vector<1x128xf32>,
    %c4_i32 = arith.constant 4 : i32
    %cst_84 = arith.constant dense<0.000000e+00> : vector<1x384xf32>
    %190 = tpu.matmul %184, %47, %cst_84 {dimension_numbers = #tpu.dot_dimension_numbers<[1], [0], [0], [1], [0, 0, 1, 1], [], []>} : vector<1x128xf32>, vector<128x384xf32>, vector<1x384xf32> -> vector<1x384xf32>
    %191 = arith.index_cast %c4_i32 : i32 to index
    %c0_85 = arith.constant 0 : index
    %192 = vector.load %arg13[%191, %c0_85] : memref<8x384xf32, #tpu.memory_space<vmem>>, vector<1x384xf32>
    %193 = vector.extract_strided_slice %192 {offsets = [0, 0], sizes = [1, 128], strides = [1, 1]} : vector<1x384xf32> to vector<1x128xf32>
    %194 = vector.extract_strided_slice %190 {offsets = [0, 0], sizes = [1, 128], strides = [1, 1]} : vector<1x384xf32> to vector<1x128xf32>
    %195 = arith.addf %193, %194 : vector<1x128xf32>
    %196 = arith.negf %195 : vector<1x128xf32>
    %197 = math.exp %196 : vector<1x128xf32>
    %cst_86 = arith.constant 1.000000e+00 : f32
    %198 = vector.broadcast %cst_86 : f32 to vector<1x128xf32>
    %199 = arith.addf %198, %197 : vector<1x128xf32>
    %200 = arith.divf %198, %199 : vector<1x128xf32>
    %201 = vector.extract_strided_slice %192 {offsets = [0, 128], sizes = [1, 128], strides = [1, 1]} : vector<1x384xf32> to vector<1x128xf32>
    %202 = vector.extract_strided_slice %190 {offsets = [0, 128], sizes = [1, 128], strides = [1, 1]} : vector<1x384xf32> to vector<1x128xf32>
    %203 = arith.addf %201, %202 : vector<1x128xf32>
    %204 = arith.negf %203 : vector<1x128xf32>
    %205 = math.exp %204 : vector<1x128xf32>
    %cst_87 = arith.constant 1.000000e+00 : f32
    %206 = vector.broadcast %cst_87 : f32 to vector<1x128xf32>
    %207 = arith.addf %206, %205 : vector<1x128xf32>
    %208 = arith.divf %206, %207 : vector<1x128xf32>
    %209 = vector.extract_strided_slice %192 {offsets = [0, 256], sizes = [1, 128], strides = [1, 1]} : vector<1x384xf32> to vector<1x128xf32>
    %210 = vector.extract_strided_slice %190 {offsets = [0, 256], sizes = [1, 128], strides = [1, 1]} : vector<1x384xf32> to vector<1x128xf32>
    %211 = arith.addf %210, %48 : vector<1x128xf32>
    %212 = arith.mulf %200, %211 : vector<1x128xf32>
    %213 = arith.addf %209, %212 : vector<1x128xf32>
    %214 = math.tanh %213 : vector<1x128xf32>
    %cst_88 = arith.constant 1.000000e+00 : f32
    %215 = vector.broadcast %cst_88 : f32 to vector<1x128xf32>
    %216 = arith.subf %215, %208 : vector<1x128xf32>
    %217 = arith.mulf %216, %214 : vector<1x128xf32>
    %218 = arith.mulf %208, %184 : vector<1x128xf32>
    %219 = arith.addf %217, %218 : vector<1x128xf32>
    %220 = arith.index_cast %c4_i32 : i32 to index
    %c0_89 = arith.constant 0 : index
    %221 = vector.load %arg14[%220, %c0_89] : memref<8x128xf32, #tpu.memory_space<vmem>>, vector<1x128xf32>
    tpu.vector_store %arg14[%220, %c0_89], %219 {strides = array<i32>} : memref<8x128xf32, #tpu.memory_space<vmem>>, vector<1x128xf32>,
    %c7_i32_90 = arith.constant 7 : i32
    %222 = arith.subi %c7_i32_90, %c4_i32 : i32
    %223 = arith.index_cast %222 : i32 to index
    %c0_91 = arith.constant 0 : index
    %224 = vector.load %arg15[%223, %c0_91] : memref<8x128xf32, #tpu.memory_space<vmem>>, vector<1x128xf32>
    tpu.vector_store %arg15[%223, %c0_91], %219 {strides = array<i32>} : memref<8x128xf32, #tpu.memory_space<vmem>>, vector<1x128xf32>,
    %c5_i32 = arith.constant 5 : i32
    %cst_92 = arith.constant dense<0.000000e+00> : vector<1x384xf32>
    %225 = tpu.matmul %219, %47, %cst_92 {dimension_numbers = #tpu.dot_dimension_numbers<[1], [0], [0], [1], [0, 0, 1, 1], [], []>} : vector<1x128xf32>, vector<128x384xf32>, vector<1x384xf32> -> vector<1x384xf32>
    %226 = arith.index_cast %c5_i32 : i32 to index
    %c0_93 = arith.constant 0 : index
    %227 = vector.load %arg13[%226, %c0_93] : memref<8x384xf32, #tpu.memory_space<vmem>>, vector<1x384xf32>
    %228 = vector.extract_strided_slice %227 {offsets = [0, 0], sizes = [1, 128], strides = [1, 1]} : vector<1x384xf32> to vector<1x128xf32>
    %229 = vector.extract_strided_slice %225 {offsets = [0, 0], sizes = [1, 128], strides = [1, 1]} : vector<1x384xf32> to vector<1x128xf32>
    %230 = arith.addf %228, %229 : vector<1x128xf32>
    %231 = arith.negf %230 : vector<1x128xf32>
    %232 = math.exp %231 : vector<1x128xf32>
    %cst_94 = arith.constant 1.000000e+00 : f32
    %233 = vector.broadcast %cst_94 : f32 to vector<1x128xf32>
    %234 = arith.addf %233, %232 : vector<1x128xf32>
    %235 = arith.divf %233, %234 : vector<1x128xf32>
    %236 = vector.extract_strided_slice %227 {offsets = [0, 128], sizes = [1, 128], strides = [1, 1]} : vector<1x384xf32> to vector<1x128xf32>
    %237 = vector.extract_strided_slice %225 {offsets = [0, 128], sizes = [1, 128], strides = [1, 1]} : vector<1x384xf32> to vector<1x128xf32>
    %238 = arith.addf %236, %237 : vector<1x128xf32>
    %239 = arith.negf %238 : vector<1x128xf32>
    %240 = math.exp %239 : vector<1x128xf32>
    %cst_95 = arith.constant 1.000000e+00 : f32
    %241 = vector.broadcast %cst_95 : f32 to vector<1x128xf32>
    %242 = arith.addf %241, %240 : vector<1x128xf32>
    %243 = arith.divf %241, %242 : vector<1x128xf32>
    %244 = vector.extract_strided_slice %227 {offsets = [0, 256], sizes = [1, 128], strides = [1, 1]} : vector<1x384xf32> to vector<1x128xf32>
    %245 = vector.extract_strided_slice %225 {offsets = [0, 256], sizes = [1, 128], strides = [1, 1]} : vector<1x384xf32> to vector<1x128xf32>
    %246 = arith.addf %245, %48 : vector<1x128xf32>
    %247 = arith.mulf %235, %246 : vector<1x128xf32>
    %248 = arith.addf %244, %247 : vector<1x128xf32>
    %249 = math.tanh %248 : vector<1x128xf32>
    %cst_96 = arith.constant 1.000000e+00 : f32
    %250 = vector.broadcast %cst_96 : f32 to vector<1x128xf32>
    %251 = arith.subf %250, %243 : vector<1x128xf32>
    %252 = arith.mulf %251, %249 : vector<1x128xf32>
    %253 = arith.mulf %243, %219 : vector<1x128xf32>
    %254 = arith.addf %252, %253 : vector<1x128xf32>
    %255 = arith.index_cast %c5_i32 : i32 to index
    %c0_97 = arith.constant 0 : index
    %256 = vector.load %arg14[%255, %c0_97] : memref<8x128xf32, #tpu.memory_space<vmem>>, vector<1x128xf32>
    tpu.vector_store %arg14[%255, %c0_97], %254 {strides = array<i32>} : memref<8x128xf32, #tpu.memory_space<vmem>>, vector<1x128xf32>,
    %c7_i32_98 = arith.constant 7 : i32
    %257 = arith.subi %c7_i32_98, %c5_i32 : i32
    %258 = arith.index_cast %257 : i32 to index
    %c0_99 = arith.constant 0 : index
    %259 = vector.load %arg15[%258, %c0_99] : memref<8x128xf32, #tpu.memory_space<vmem>>, vector<1x128xf32>
    tpu.vector_store %arg15[%258, %c0_99], %254 {strides = array<i32>} : memref<8x128xf32, #tpu.memory_space<vmem>>, vector<1x128xf32>,
    %c6_i32 = arith.constant 6 : i32
    %cst_100 = arith.constant dense<0.000000e+00> : vector<1x384xf32>
    %260 = tpu.matmul %254, %47, %cst_100 {dimension_numbers = #tpu.dot_dimension_numbers<[1], [0], [0], [1], [0, 0, 1, 1], [], []>} : vector<1x128xf32>, vector<128x384xf32>, vector<1x384xf32> -> vector<1x384xf32>
    %261 = arith.index_cast %c6_i32 : i32 to index
    %c0_101 = arith.constant 0 : index
    %262 = vector.load %arg13[%261, %c0_101] : memref<8x384xf32, #tpu.memory_space<vmem>>, vector<1x384xf32>
    %263 = vector.extract_strided_slice %262 {offsets = [0, 0], sizes = [1, 128], strides = [1, 1]} : vector<1x384xf32> to vector<1x128xf32>
    %264 = vector.extract_strided_slice %260 {offsets = [0, 0], sizes = [1, 128], strides = [1, 1]} : vector<1x384xf32> to vector<1x128xf32>
    %265 = arith.addf %263, %264 : vector<1x128xf32>
    %266 = arith.negf %265 : vector<1x128xf32>
    %267 = math.exp %266 : vector<1x128xf32>
    %cst_102 = arith.constant 1.000000e+00 : f32
    %268 = vector.broadcast %cst_102 : f32 to vector<1x128xf32>
    %269 = arith.addf %268, %267 : vector<1x128xf32>
    %270 = arith.divf %268, %269 : vector<1x128xf32>
    %271 = vector.extract_strided_slice %262 {offsets = [0, 128], sizes = [1, 128], strides = [1, 1]} : vector<1x384xf32> to vector<1x128xf32>
    %272 = vector.extract_strided_slice %260 {offsets = [0, 128], sizes = [1, 128], strides = [1, 1]} : vector<1x384xf32> to vector<1x128xf32>
    %273 = arith.addf %271, %272 : vector<1x128xf32>
    %274 = arith.negf %273 : vector<1x128xf32>
    %275 = math.exp %274 : vector<1x128xf32>
    %cst_103 = arith.constant 1.000000e+00 : f32
    %276 = vector.broadcast %cst_103 : f32 to vector<1x128xf32>
    %277 = arith.addf %276, %275 : vector<1x128xf32>
    %278 = arith.divf %276, %277 : vector<1x128xf32>
    %279 = vector.extract_strided_slice %262 {offsets = [0, 256], sizes = [1, 128], strides = [1, 1]} : vector<1x384xf32> to vector<1x128xf32>
    %280 = vector.extract_strided_slice %260 {offsets = [0, 256], sizes = [1, 128], strides = [1, 1]} : vector<1x384xf32> to vector<1x128xf32>
    %281 = arith.addf %280, %48 : vector<1x128xf32>
    %282 = arith.mulf %270, %281 : vector<1x128xf32>
    %283 = arith.addf %279, %282 : vector<1x128xf32>
    %284 = math.tanh %283 : vector<1x128xf32>
    %cst_104 = arith.constant 1.000000e+00 : f32
    %285 = vector.broadcast %cst_104 : f32 to vector<1x128xf32>
    %286 = arith.subf %285, %278 : vector<1x128xf32>
    %287 = arith.mulf %286, %284 : vector<1x128xf32>
    %288 = arith.mulf %278, %254 : vector<1x128xf32>
    %289 = arith.addf %287, %288 : vector<1x128xf32>
    %290 = arith.index_cast %c6_i32 : i32 to index
    %c0_105 = arith.constant 0 : index
    %291 = vector.load %arg14[%290, %c0_105] : memref<8x128xf32, #tpu.memory_space<vmem>>, vector<1x128xf32>
    tpu.vector_store %arg14[%290, %c0_105], %289 {strides = array<i32>} : memref<8x128xf32, #tpu.memory_space<vmem>>, vector<1x128xf32>,
    %c7_i32_106 = arith.constant 7 : i32
    %292 = arith.subi %c7_i32_106, %c6_i32 : i32
    %293 = arith.index_cast %292 : i32 to index
    %c0_107 = arith.constant 0 : index
    %294 = vector.load %arg15[%293, %c0_107] : memref<8x128xf32, #tpu.memory_space<vmem>>, vector<1x128xf32>
    tpu.vector_store %arg15[%293, %c0_107], %289 {strides = array<i32>} : memref<8x128xf32, #tpu.memory_space<vmem>>, vector<1x128xf32>,
    %c7_i32_108 = arith.constant 7 : i32
    %cst_109 = arith.constant dense<0.000000e+00> : vector<1x384xf32>
    %295 = tpu.matmul %289, %47, %cst_109 {dimension_numbers = #tpu.dot_dimension_numbers<[1], [0], [0], [1], [0, 0, 1, 1], [], []>} : vector<1x128xf32>, vector<128x384xf32>, vector<1x384xf32> -> vector<1x384xf32>
    %296 = arith.index_cast %c7_i32_108 : i32 to index
    %c0_110 = arith.constant 0 : index
    %297 = vector.load %arg13[%296, %c0_110] : memref<8x384xf32, #tpu.memory_space<vmem>>, vector<1x384xf32>
    %298 = vector.extract_strided_slice %297 {offsets = [0, 0], sizes = [1, 128], strides = [1, 1]} : vector<1x384xf32> to vector<1x128xf32>
    %299 = vector.extract_strided_slice %295 {offsets = [0, 0], sizes = [1, 128], strides = [1, 1]} : vector<1x384xf32> to vector<1x128xf32>
    %300 = arith.addf %298, %299 : vector<1x128xf32>
    %301 = arith.negf %300 : vector<1x128xf32>
    %302 = math.exp %301 : vector<1x128xf32>
    %cst_111 = arith.constant 1.000000e+00 : f32
    %303 = vector.broadcast %cst_111 : f32 to vector<1x128xf32>
    %304 = arith.addf %303, %302 : vector<1x128xf32>
    %305 = arith.divf %303, %304 : vector<1x128xf32>
    %306 = vector.extract_strided_slice %297 {offsets = [0, 128], sizes = [1, 128], strides = [1, 1]} : vector<1x384xf32> to vector<1x128xf32>
    %307 = vector.extract_strided_slice %295 {offsets = [0, 128], sizes = [1, 128], strides = [1, 1]} : vector<1x384xf32> to vector<1x128xf32>
    %308 = arith.addf %306, %307 : vector<1x128xf32>
    %309 = arith.negf %308 : vector<1x128xf32>
    %310 = math.exp %309 : vector<1x128xf32>
    %cst_112 = arith.constant 1.000000e+00 : f32
    %311 = vector.broadcast %cst_112 : f32 to vector<1x128xf32>
    %312 = arith.addf %311, %310 : vector<1x128xf32>
    %313 = arith.divf %311, %312 : vector<1x128xf32>
    %314 = vector.extract_strided_slice %297 {offsets = [0, 256], sizes = [1, 128], strides = [1, 1]} : vector<1x384xf32> to vector<1x128xf32>
    %315 = vector.extract_strided_slice %295 {offsets = [0, 256], sizes = [1, 128], strides = [1, 1]} : vector<1x384xf32> to vector<1x128xf32>
    %316 = arith.addf %315, %48 : vector<1x128xf32>
    %317 = arith.mulf %305, %316 : vector<1x128xf32>
    %318 = arith.addf %314, %317 : vector<1x128xf32>
    %319 = math.tanh %318 : vector<1x128xf32>
    %cst_113 = arith.constant 1.000000e+00 : f32
    %320 = vector.broadcast %cst_113 : f32 to vector<1x128xf32>
    %321 = arith.subf %320, %313 : vector<1x128xf32>
    %322 = arith.mulf %321, %319 : vector<1x128xf32>
    %323 = arith.mulf %313, %289 : vector<1x128xf32>
    %324 = arith.addf %322, %323 : vector<1x128xf32>
    %325 = arith.index_cast %c7_i32_108 : i32 to index
    %c0_114 = arith.constant 0 : index
    %326 = vector.load %arg14[%325, %c0_114] : memref<8x128xf32, #tpu.memory_space<vmem>>, vector<1x128xf32>
    tpu.vector_store %arg14[%325, %c0_114], %324 {strides = array<i32>} : memref<8x128xf32, #tpu.memory_space<vmem>>, vector<1x128xf32>,
    %c7_i32_115 = arith.constant 7 : i32
    %327 = arith.subi %c7_i32_115, %c7_i32_108 : i32
    %328 = arith.index_cast %327 : i32 to index
    %c0_116 = arith.constant 0 : index
    %329 = vector.load %arg15[%328, %c0_116] : memref<8x128xf32, #tpu.memory_space<vmem>>, vector<1x128xf32>
    tpu.vector_store %arg15[%328, %c0_116], %324 {strides = array<i32>} : memref<8x128xf32, #tpu.memory_space<vmem>>, vector<1x128xf32>,
    %c8_i32 = arith.constant 8 : i32
    %330 = vector.extract_strided_slice %324 {offsets = [0, 0], sizes = [1, 50], strides = [1, 1]} : vector<1x128xf32> to vector<1x50xf32>
    %c0_117 = arith.constant 0 : index
    %c0_118 = arith.constant 0 : index
    %331 = vector.load %arg11[%c0_117, %c0_118] : memref<2x50xf32, #tpu.memory_space<vmem>>, vector<1x50xf32>
    tpu.vector_store %arg11[%c0_117, %c0_118], %330 {strides = array<i32>} : memref<2x50xf32, #tpu.memory_space<vmem>>, vector<1x50xf32>,
    %332 = vector.extract_strided_slice %324 {offsets = [0, 64], sizes = [1, 50], strides = [1, 1]} : vector<1x128xf32> to vector<1x50xf32>
    %c1_119 = arith.constant 1 : index
    %c0_120 = arith.constant 0 : index
    %333 = vector.load %arg11[%c1_119, %c0_120] : memref<2x50xf32, #tpu.memory_space<vmem>>, vector<1x50xf32>
    tpu.vector_store %arg11[%c1_119, %c0_120], %332 {strides = array<i32>} : memref<2x50xf32, #tpu.memory_space<vmem>>, vector<1x50xf32>,
    %334 = tpu.iota {dimensions = array<i32: 1>} : vector<8x128xi32>
    %c64_i32 = arith.constant 64 : i32
    %335 = vector.broadcast %c64_i32 : i32 to vector<8x128xi32>
    %336 = arith.cmpi slt, %334, %335 : vector<8x128xi32>
    %c0_121 = arith.constant 0 : index
    %c0_122 = arith.constant 0 : index
    %337 = vector.load %arg14[%c0_121, %c0_122] : memref<8x128xf32, #tpu.memory_space<vmem>>, vector<8x128xf32>
    %c0_123 = arith.constant 0 : index
    %c0_124 = arith.constant 0 : index
    %338 = vector.load %arg15[%c0_123, %c0_124] : memref<8x128xf32, #tpu.memory_space<vmem>>, vector<8x128xf32>
    %339 = arith.select %336, %337, %338 : vector<8x128xi1>, vector<8x128xf32>
    %c0_125 = arith.constant 0 : index
    %c0_126 = arith.constant 0 : index
    %340 = vector.load %arg7[%c0_125, %c0_126] : memref<128x128xf32, #tpu.memory_space<vmem>>, vector<128x128xf32>
    %cst_127 = arith.constant dense<0.000000e+00> : vector<8x128xf32>
    %341 = tpu.matmul %339, %340, %cst_127 {dimension_numbers = #tpu.dot_dimension_numbers<[1], [0], [0], [1], [0, 0, 1, 1], [], []>} : vector<8x128xf32>, vector<128x128xf32>, vector<8x128xf32> -> vector<8x128xf32>
    %c0_128 = arith.constant 0 : index
    %c0_129 = arith.constant 0 : index
    %342 = vector.load %arg8[%c0_128, %c0_129] : memref<1x128xf32, #tpu.memory_space<vmem>>, vector<1x128xf32>
    %343 = vector.broadcast %342 : vector<1x128xf32> to vector<8x128xf32>
    %344 = arith.addf %341, %343 : vector<8x128xf32>
    %345 = math.tanh %344 : vector<8x128xf32>
    %c0_130 = arith.constant 0 : index
    %c0_131 = arith.constant 0 : index
    %346 = vector.load %arg9[%c0_130, %c0_131] : memref<1x128xf32, #tpu.memory_space<vmem>>, vector<1x128xf32>
    %347 = vector.broadcast %346 : vector<1x128xf32> to vector<8x128xf32>
    %348 = arith.mulf %345, %347 : vector<8x128xf32>
    %cst_132 = arith.constant dense<0.000000e+00> : vector<8xf32>
    %349 = vector.multi_reduction <add>, %348, %cst_132 [1] : vector<8x128xf32> to vector<8xf32>
    %350 = vector.shape_cast %349 : vector<8xf32> to vector<8x1xf32>
    %cst_133 = arith.constant dense<0xFF800000> : vector<1xf32>
    %351 = vector.multi_reduction <maximumf>, %350, %cst_133 [0] : vector<8x1xf32> to vector<1xf32>
    %352 = vector.shape_cast %351 : vector<1xf32> to vector<1x1xf32>
    %353 = vector.broadcast %352 : vector<1x1xf32> to vector<8x1xf32>
    %354 = arith.subf %350, %353 : vector<8x1xf32>
    %355 = math.exp %354 : vector<8x1xf32>
    %cst_134 = arith.constant dense<0.000000e+00> : vector<1xf32>
    %356 = vector.multi_reduction <add>, %355, %cst_134 [0] : vector<8x1xf32> to vector<1xf32>
    %357 = vector.shape_cast %356 : vector<1xf32> to vector<1x1xf32>
    %358 = vector.broadcast %357 : vector<1x1xf32> to vector<8x1xf32>
    %359 = arith.divf %355, %358 : vector<8x1xf32>
    %360 = vector.broadcast %359 : vector<8x1xf32> to vector<8x128xf32>
    %361 = arith.mulf %360, %339 : vector<8x128xf32>
    %cst_135 = arith.constant dense<0.000000e+00> : vector<128xf32>
    %362 = vector.multi_reduction <add>, %361, %cst_135 [0] : vector<8x128xf32> to vector<128xf32>
    %363 = vector.shape_cast %362 : vector<128xf32> to vector<1x128xf32>
    %364 = vector.extract_strided_slice %363 {offsets = [0, 0], sizes = [1, 50], strides = [1, 1]} : vector<1x128xf32> to vector<1x50xf32>
    %c0_136 = arith.constant 0 : index
    %c0_137 = arith.constant 0 : index
    %365 = vector.load %arg10[%c0_136, %c0_137] : memref<1x100xf32, #tpu.memory_space<vmem>>, vector<1x50xf32>
    tpu.vector_store %arg10[%c0_136, %c0_137], %364 {strides = array<i32>} : memref<1x100xf32, #tpu.memory_space<vmem>>, vector<1x50xf32>,
    %366 = vector.extract_strided_slice %363 {offsets = [0, 64], sizes = [1, 50], strides = [1, 1]} : vector<1x128xf32> to vector<1x50xf32>
    %c0_138 = arith.constant 0 : index
    %c50 = arith.constant 50 : index
    %367 = vector.load %arg10[%c0_138, %c50] : memref<1x100xf32, #tpu.memory_space<vmem>>, vector<1x50xf32>
    tpu.vector_store %arg10[%c0_138, %c50], %366 {strides = array<i32>} : memref<1x100xf32, #tpu.memory_space<vmem>>, vector<1x50xf32>,
    return
  }
}

</mosaic_0001>

<llo_original>
// kernel: han_word_encoder.1
$region0: #{han_word_encoder.1}
  #allocation0 [shape = 'u32[]', space=smem, size = 0x4, offset = 0x4, fixed_abs, tag = 'smem constant byte address 0x4 - core index']
  #allocation1 [shape = 'u32[72,128]{1,0:T(1,128)}', space=vmem, size = 0x9000, scoped, tag = 'internal scratch']
  #allocation2 [shape = 'f32[8,512]{1,0:T(8,128)}', space=vmem, size = 0x4000, scoped, tag = 'scratch operand']
  #allocation3 [shape = 'f32[8,384]{1,0:T(8,128)}', space=vmem, size = 0x3000, scoped, tag = 'scratch operand']
  #allocation4 [shape = 'f32[8,128]{1,0:T(8,128)}', space=vmem, size = 0x1000, scoped, tag = 'scratch operand']
  #allocation5 [shape = 'f32[8,128]{1,0:T(8,128)}', space=vmem, size = 0x1000, scoped, tag = 'scratch operand']
  %s0 = inlined_call_operand.vmem [shape: s32[8], index: 0, kind: input, shape index: {}]
  %s1 = inlined_call_operand.vmem [shape: f32[1,128], index: 1, kind: input, shape index: {}]
  %s2 = inlined_call_operand.hbm [shape: f32[128,256], index: 2, kind: input, shape index: {}]
  %s3 = inlined_call_operand.hbm [shape: f32[512,384], index: 3, kind: input, shape index: {}]
  %s4 = inlined_call_operand.vmem [shape: f32[1,384], index: 4, kind: input, shape index: {}]
  %s5 = inlined_call_operand.hbm [shape: f32[128,384], index: 5, kind: input, shape index: {}]
  %s6 = inlined_call_operand.vmem [shape: f32[1,128], index: 6, kind: input, shape index: {}]
  %s7 = inlined_call_operand.hbm [shape: f32[128,128], index: 7, kind: input, shape index: {}]
  %s8 = inlined_call_operand.vmem [shape: f32[1,128], index: 8, kind: input, shape index: {}]
  %s9 = inlined_call_operand.vmem [shape: f32[1,128], index: 9, kind: input, shape index: {}]
  %s10 = inlined_call_operand.hbm [shape: f32[1,100], index: 10, kind: output, shape index: {0}]
  %s11 = inlined_call_operand.hbm [shape: f32[2,50], index: 11, kind: output, shape index: {1}]
  %12 = xla_tuple %s10, %s11
  %s13 = sld [smem:[#allocation0]]
  $region78: #{han_word_encoder.1} parent=0
    _
  %s15 = ssub.s32 1, %s13
  %s16 = scalar_select 0, %s15, %s13
  $region1: #{han_word_encoder.1} parent=0
    #allocation6 [shape = 'u8[512]{0}', space=smem, size = 0x200, scoped, tag = 'input window, operand 0, single buffered']
    #allocation7 [shape = 's32[1]{0}', space=sflag, size = 0x4, scoped, tag = 'scoped memory for han_word_encoder.1']
    #allocation8 [shape = 's32[1]{0}', space=sflag, size = 0x4, scoped, tag = 'scoped memory for han_word_encoder.1']
    #allocation9 [shape = 's32[1]{0}', space=sflag, size = 0x4, scoped, tag = 'scoped memory for han_word_encoder.1']
    #allocation10 [shape = 'u8[131072]{0}', space=vmem, size = 0x20000, scoped, tag = 'input window, operand 2, single buffered']
    #allocation11 [shape = 'u8[786432]{0}', space=vmem, size = 0xc0000, scoped, tag = 'input window, operand 3, single buffered']
    #allocation12 [shape = 's32[1]{0}', space=sflag, size = 0x4, scoped, tag = 'scoped memory for han_word_encoder.1']
    #allocation13 [shape = 'u8[196608]{0}', space=vmem, size = 0x30000, scoped, tag = 'input window, operand 5, single buffered']
    #allocation14 [shape = 'u8[65536]{0}', space=vmem, size = 0x10000, scoped, tag = 'input window, operand 7, single buffered']
    #allocation15 [shape = 's32[1]{0}', space=sflag, size = 0x4, scoped, tag = 'scoped memory for han_word_encoder.1']
    #allocation16 [shape = 'u8[512]{0}', space=vmem, size = 0x400, scoped, tag = 'output window, operand 0, single buffered']
    #allocation17 [shape = 'u8[1024]{0}', space=vmem, size = 0x400, scoped, tag = 'output window, operand 1, single buffered']
    #allocation18 [shape = 's32[1]{0}', space=sflag, size = 0x4, scoped, tag = 'scoped memory for han_word_encoder.1']
    %17 = vsyncpa [#allocation9], 0
    %18 = vsyncpa [#allocation7], 0
    %19 = vsyncpa [#allocation12], 0
    %20 = vsyncpa [#allocation15], 0
    %21 = vsyncpa [#allocation8], 0
    %22 = vsyncpa [#allocation18], 0
    // Predicated region
    $region2: #{han_word_encoder.1} parent=1 // pred_check
      _
    $region3: #{han_word_encoder.1} parent=1 // pred_check_branch
      %24 = sbr.rel (0) target = $region5
    $region4: #{han_word_encoder.1} parent=1 // pred_region
      %26 = vsyncadd [#allocation9], 0
      %s28 = sshll.u32 %s0, 4
      %s29 = int_to_ptr.vmem [resolvable:$true] %s28
      %31 = dma.vmem_to_smem %s29, 16, [#allocation6], [#allocation9]
    $region5: #{han_word_encoder.1} parent=1 // pred_fallthru
      _
    // Predicated region
    $region6: #{han_word_encoder.1} parent=1 // pred_check
      _
    $region7: #{han_word_encoder.1} parent=1 // pred_check_branch
      %33 = sbr.rel (0) target = $region9
    $region8: #{han_word_encoder.1} parent=1 // pred_region
      _
    $region9: #{han_word_encoder.1} parent=1 // pred_fallthru
      _
    // Predicated region
    $region10: #{han_word_encoder.1} parent=1 // pred_check
      _
    $region11: #{han_word_encoder.1} parent=1 // pred_check_branch
      %35 = sbr.rel (0) target = $region13
    $region12: #{han_word_encoder.1} parent=1 // pred_region
      %37 = vsyncadd [#allocation7], 0
      %s38 = sshll.u32 %s2, 4
      %s39 = int_to_ptr.hbm [resolvable:$true] %s38
      %s40 = sshll.u32 [#allocation10], 4
      %s41 = int_to_ptr.vmem [resolvable:$true] %s40
      %46 = dma.hbm_to_vmem [thread:$0]  %s39, 4096, %s41, [#allocation7], 256, 256, 16
    $region13: #{han_word_encoder.1} parent=1 // pred_fallthru
      _
    // Predicated region
    $region14: #{han_word_encoder.1} parent=1 // pred_check
      _
    $region15: #{han_word_encoder.1} parent=1 // pred_check_branch
      %48 = sbr.rel (0) target = $region17
    $region16: #{han_word_encoder.1} parent=1 // pred_region
      %50 = vsyncadd [#allocation12], 0
      %s51 = sshll.u32 %s3, 4
      %s52 = int_to_ptr.hbm [resolvable:$true] %s51
      %s53 = sshll.u32 [#allocation11], 4
      %s54 = int_to_ptr.vmem [resolvable:$true] %s53
      %59 = dma.hbm_to_vmem [thread:$0]  %s52, 24576, %s54, [#allocation12], 384, 384, 24
    $region17: #{han_word_encoder.1} parent=1 // pred_fallthru
      _
    // Predicated region
    $region18: #{han_word_encoder.1} parent=1 // pred_check
      _
    $region19: #{han_word_encoder.1} parent=1 // pred_check_branch
      %61 = sbr.rel (0) target = $region21
    $region20: #{han_word_encoder.1} parent=1 // pred_region
      _
    $region21: #{han_word_encoder.1} parent=1 // pred_fallthru
      _
    // Predicated region
    $region22: #{han_word_encoder.1} parent=1 // pred_check
      _
    $region23: #{han_word_encoder.1} parent=1 // pred_check_branch
      %63 = sbr.rel (0) target = $region25
    $region24: #{han_word_encoder.1} parent=1 // pred_region
      %65 = vsyncadd [#allocation12], 0
      %s66 = sshll.u32 %s5, 4
      %s67 = int_to_ptr.hbm [resolvable:$true] %s66
      %s68 = sshll.u32 [#allocation13], 4
      %s69 = int_to_ptr.vmem [resolvable:$true] %s68
      %74 = dma.hbm_to_vmem [thread:$0]  %s67, 6144, %s69, [#allocation12], 384, 384, 24
    $region25: #{han_word_encoder.1} parent=1 // pred_fallthru
      _
    // Predicated region
    $region26: #{han_word_encoder.1} parent=1 // pred_check
      _
    $region27: #{han_word_encoder.1} parent=1 // pred_check_branch
      %76 = sbr.rel (0) target = $region29
    $region28: #{han_word_encoder.1} parent=1 // pred_region
      _
    $region29: #{han_word_encoder.1} parent=1 // pred_fallthru
      _
    // Predicated region
    $region30: #{han_word_encoder.1} parent=1 // pred_check
      _
    $region31: #{han_word_encoder.1} parent=1 // pred_check_branch
      %78 = sbr.rel (0) target = $region33
    $region32: #{han_word_encoder.1} parent=1 // pred_region
      %80 = vsyncadd [#allocation15], 0
      %s81 = sshll.u32 %s7, 4
      %s82 = int_to_ptr.hbm [resolvable:$true] %s81
      %s83 = sshll.u32 [#allocation14], 4
      %s84 = int_to_ptr.vmem [resolvable:$true] %s83
      %89 = dma.hbm_to_vmem [thread:$0]  %s82, 2048, %s84, [#allocation15], 128, 128, 8
    $region33: #{han_word_encoder.1} parent=1 // pred_fallthru
      _
    // Predicated region
    $region34: #{han_word_encoder.1} parent=1 // pred_check
      _
    $region35: #{han_word_encoder.1} parent=1 // pred_check_branch
      %91 = sbr.rel (0) target = $region37
    $region36: #{han_word_encoder.1} parent=1 // pred_region
      _
    $region37: #{han_word_encoder.1} parent=1 // pred_fallthru
      _
    // Predicated region
    $region38: #{han_word_encoder.1} parent=1 // pred_check
      _
    $region39: #{han_word_encoder.1} parent=1 // pred_check_branch
      %93 = sbr.rel (0) target = $region41
    $region40: #{han_word_encoder.1} parent=1 // pred_region
      _
    $region41: #{han_word_encoder.1} parent=1 // pred_fallthru
      _
    // Predicated region
    $region42: #{han_word_encoder.1} parent=1 // pred_check
      _
    $region43: #{han_word_encoder.1} parent=1 // pred_check_branch
      %95 = sbr.rel (0) target = $region45
    $region44: #{han_word_encoder.1} parent=1 // pred_region
      %97 = dma.done [#allocation9], 16
    $region45: #{han_word_encoder.1} parent=1 // pred_fallthru
      _
    // Predicated region
    $region46: #{han_word_encoder.1} parent=1 // pred_check
      _
    $region47: #{han_word_encoder.1} parent=1 // pred_check_branch
      %99 = sbr.rel (0) target = $region49
    $region48: #{han_word_encoder.1} parent=1 // pred_region
      %101 = dma.done [#allocation7], 4096
    $region49: #{han_word_encoder.1} parent=1 // pred_fallthru
      _
    // Predicated region
    $region50: #{han_word_encoder.1} parent=1 // pred_check
      _
    $region51: #{han_word_encoder.1} parent=1 // pred_check_branch
      %103 = sbr.rel (0) target = $region53
    $region52: #{han_word_encoder.1} parent=1 // pred_region
      %105 = dma.done [#allocation12], 24576
    $region53: #{han_word_encoder.1} parent=1 // pred_fallthru
      _
    // Predicated region
    $region54: #{han_word_encoder.1} parent=1 // pred_check
      _
    $region55: #{han_word_encoder.1} parent=1 // pred_check_branch
      %107 = sbr.rel (0) target = $region57
    $region56: #{han_word_encoder.1} parent=1 // pred_region
      %109 = dma.done [#allocation12], 6144
    $region57: #{han_word_encoder.1} parent=1 // pred_fallthru
      _
    // Predicated region
    $region58: #{han_word_encoder.1} parent=1 // pred_check
      _
    $region59: #{han_word_encoder.1} parent=1 // pred_check_branch
      %111 = sbr.rel (0) target = $region61
    $region60: #{han_word_encoder.1} parent=1 // pred_region
      %113 = dma.done [#allocation15], 2048
    $region61: #{han_word_encoder.1} parent=1 // pred_fallthru
      _
    %114 = sfence
    %s115 = sld [smem:[#allocation6]]
    %s116 = sshra.s32 %s115, 3
    %s117 = sand.u32 %s115, 7
    %s118 = sshra.s32 %s115, 3
    %s119 = sand.u32 %s115, 7
    %s120 = smul.u32 %s116, 2
    %s121 = smul.u32 %s120, 8
    %s122 = sadd.s32 %s121, %s119
    %s123 = scalar_lea.vmem [#allocation10], %s122
    %v124 = vld [vmem:[%s123] ss:$8 sm:$0x3]
    %v125 = vlaneseq
    %vm126 = vcmp.ge.s32.totalorder %v125, 0
    %vm127 = vcmp.lt.s32.totalorder %v125, 256
    %vm128 = vmand %vm126, %vm127
    %129 = vst.msk [vmem:[#allocation2] ss:$8 sm:$0x3] %vm128, %v124
    %130 = vst.msk [vmem:[#allocation2] ss:$8 sm:$0x0] %vm128, %v124
    %s131 = scalar_lea.vmem [#allocation2], 23
    %132 = vst.msk [vmem:[%s131] ss:$8 sm:$0x3] %vm128, %v124
    %133 = vst.msk [vmem:[%s131] ss:$8 sm:$0x0] %vm128, %v124
    %s134 = sld [smem:[#allocation6 + $0x1]]
    %s135 = sshra.s32 %s134, 3
    %s136 = sand.u32 %s134, 7
    %s137 = sshra.s32 %s134, 3
    %s138 = sand.u32 %s134, 7
    %s139 = smul.u32 %s135, 2
    %s140 = smul.u32 %s139, 8
    %s141 = sadd.s32 %s140, %s138
    %s142 = scalar_lea.vmem [#allocation10], %s141
    %v143 = vld [vmem:[%s142] ss:$8 sm:$0x3]
    %s144 = scalar_lea.vmem [#allocation2], 1
    %145 = vst.msk [vmem:[%s144] ss:$8 sm:$0x3] %vm128, %v143
    %146 = vst.msk [vmem:[%s144] ss:$8 sm:$0x0] %vm128, %v143
    %s147 = scalar_lea.vmem [#allocation2], 22
    %148 = vst.msk [vmem:[%s147] ss:$8 sm:$0x3] %vm128, %v143
    %149 = vst.msk [vmem:[%s147] ss:$8 sm:$0x0] %vm128, %v143
    %s150 = sld [smem:[#allocation6 + $0x2]]
    %s151 = sshra.s32 %s150, 3
    %s152 = sand.u32 %s150, 7
    %s153 = sshra.s32 %s150, 3
    %s154 = sand.u32 %s150, 7
    %s155 = smul.u32 %s151, 2
    %s156 = smul.u32 %s155, 8
    %s157 = sadd.s32 %s156, %s154
    %s158 = scalar_lea.vmem [#allocation10], %s157
    %v159 = vld [vmem:[%s158] ss:$8 sm:$0x3]
    %s160 = scalar_lea.vmem [#allocation2], 2
    %161 = vst.msk [vmem:[%s160] ss:$8 sm:$0x3] %vm128, %v159
    %162 = vst.msk [vmem:[%s160] ss:$8 sm:$0x0] %vm128, %v159
    %s163 = scalar_lea.vmem [#allocation2], 21
    %164 = vst.msk [vmem:[%s163] ss:$8 sm:$0x3] %vm128, %v159
    %165 = vst.msk [vmem:[%s163] ss:$8 sm:$0x0] %vm128, %v159
    %s166 = sld [smem:[#allocation6 + $0x3]]
    %s167 = sshra.s32 %s166, 3
    %s168 = sand.u32 %s166, 7
    %s169 = sshra.s32 %s166, 3
    %s170 = sand.u32 %s166, 7
    %s171 = smul.u32 %s167, 2
    %s172 = smul.u32 %s171, 8
    %s173 = sadd.s32 %s172, %s170
    %s174 = scalar_lea.vmem [#allocation10], %s173
    %v175 = vld [vmem:[%s174] ss:$8 sm:$0x3]
    %s176 = scalar_lea.vmem [#allocation2], 3
    %177 = vst.msk [vmem:[%s176] ss:$8 sm:$0x3] %vm128, %v175
    %178 = vst.msk [vmem:[%s176] ss:$8 sm:$0x0] %vm128, %v175
    %s179 = scalar_lea.vmem [#allocation2], 20
    %180 = vst.msk [vmem:[%s179] ss:$8 sm:$0x3] %vm128, %v175
    %181 = vst.msk [vmem:[%s179] ss:$8 sm:$0x0] %vm128, %v175
    %s182 = sld [smem:[#allocation6 + $0x4]]
    %s183 = sshra.s32 %s182, 3
    %s184 = sand.u32 %s182, 7
    %s185 = sshra.s32 %s182, 3
    %s186 = sand.u32 %s182, 7
    %s187 = smul.u32 %s183, 2
    %s188 = smul.u32 %s187, 8
    %s189 = sadd.s32 %s188, %s186
    %s190 = scalar_lea.vmem [#allocation10], %s189
    %v191 = vld [vmem:[%s190] ss:$8 sm:$0x3]
    %s192 = scalar_lea.vmem [#allocation2], 4
    %193 = vst.msk [vmem:[%s192] ss:$8 sm:$0x3] %vm128, %v191
    %194 = vst.msk [vmem:[%s192] ss:$8 sm:$0x0] %vm128, %v191
    %s195 = scalar_lea.vmem [#allocation2], 19
    %196 = vst.msk [vmem:[%s195] ss:$8 sm:$0x3] %vm128, %v191
    %197 = vst.msk [vmem:[%s195] ss:$8 sm:$0x0] %vm128, %v191
    %s198 = sld [smem:[#allocation6 + $0x5]]
    %s199 = sshra.s32 %s198, 3
    %s200 = sand.u32 %s198, 7
    %s201 = sshra.s32 %s198, 3
    %s202 = sand.u32 %s198, 7
    %s203 = smul.u32 %s199, 2
    %s204 = smul.u32 %s203, 8
    %s205 = sadd.s32 %s204, %s202
    %s206 = scalar_lea.vmem [#allocation10], %s205
    %v207 = vld [vmem:[%s206] ss:$8 sm:$0x3]
    %s208 = scalar_lea.vmem [#allocation2], 5
    %209 = vst.msk [vmem:[%s208] ss:$8 sm:$0x3] %vm128, %v207
    %210 = vst.msk [vmem:[%s208] ss:$8 sm:$0x0] %vm128, %v207
    %s211 = scalar_lea.vmem [#allocation2], 18
    %212 = vst.msk [vmem:[%s211] ss:$8 sm:$0x3] %vm128, %v207
    %213 = vst.msk [vmem:[%s211] ss:$8 sm:$0x0] %vm128, %v207
    %s214 = sld [smem:[#allocation6 + $0x6]]
    %s215 = sshra.s32 %s214, 3
    %s216 = sand.u32 %s214, 7
    %s217 = sshra.s32 %s214, 3
    %s218 = sand.u32 %s214, 7
    %s219 = smul.u32 %s215, 2
    %s220 = smul.u32 %s219, 8
    %s221 = sadd.s32 %s220, %s218
    %s222 = scalar_lea.vmem [#allocation10], %s221
    %v223 = vld [vmem:[%s222] ss:$8 sm:$0x3]
    %s224 = scalar_lea.vmem [#allocation2], 6
    %225 = vst.msk [vmem:[%s224] ss:$8 sm:$0x3] %vm128, %v223
    %226 = vst.msk [vmem:[%s224] ss:$8 sm:$0x0] %vm128, %v223
    %s227 = scalar_lea.vmem [#allocation2], 17
    %228 = vst.msk [vmem:[%s227] ss:$8 sm:$0x3] %vm128, %v223
    %229 = vst.msk [vmem:[%s227] ss:$8 sm:$0x0] %vm128, %v223
    %s230 = sld [smem:[#allocation6 + $0x7]]
    %s231 = sshra.s32 %s230, 3
    %s232 = sand.u32 %s230, 7
    %s233 = sshra.s32 %s230, 3
    %s234 = sand.u32 %s230, 7
    %s235 = smul.u32 %s231, 2
    %s236 = smul.u32 %s235, 8
    %s237 = sadd.s32 %s236, %s234
    %s238 = scalar_lea.vmem [#allocation10], %s237
    %v239 = vld [vmem:[%s238] ss:$8 sm:$0x3]
    %s240 = scalar_lea.vmem [#allocation2], 7
    %241 = vst.msk [vmem:[%s240] ss:$8 sm:$0x3] %vm128, %v239
    %242 = vst.msk [vmem:[%s240] ss:$8 sm:$0x0] %vm128, %v239
    %s243 = scalar_lea.vmem [#allocation2], 16
    %244 = vst.msk [vmem:[%s243] ss:$8 sm:$0x3] %vm128, %v239
    %245 = vst.msk [vmem:[%s243] ss:$8 sm:$0x0] %vm128, %v239
    %v246 = vld [vmem:[#allocation2] sm:$0xff]
    %v247 = vld [vmem:[#allocation2 + $0x8] sm:$0xff]
    %v248 = vld [vmem:[#allocation2 + $0x10] sm:$0xff]
    %v249 = vld [vmem:[#allocation2 + $0x18] sm:$0xff]
    %v250 = vld [vmem:[#allocation11] sm:$0xff]
    %v251 = vld [vmem:[#allocation11 + $0x8] sm:$0xff]
    %v252 = vld [vmem:[#allocation11 + $0x10] sm:$0xff]
    %v253 = vld [vmem:[#allocation11 + $0x18] sm:$0xff]
    %v254 = vld [vmem:[#allocation11 + $0x20] sm:$0xff]
    %v255 = vld [vmem:[#allocation11 + $0x28] sm:$0xff]
    %v256 = vld [vmem:[#allocation11 + $0x30] sm:$0xff]
    %v257 = vld [vmem:[#allocation11 + $0x38] sm:$0xff]
    %v258 = vld [vmem:[#allocation11 + $0x40] sm:$0xff]
    %v259 = vld [vmem:[#allocation11 + $0x48] sm:$0xff]
    %v260 = vld [vmem:[#allocation11 + $0x50] sm:$0xff]
    %v261 = vld [vmem:[#allocation11 + $0x58] sm:$0xff]
    %v262 = vld [vmem:[#allocation11 + $0x60] sm:$0xff]
    %v263 = vld [vmem:[#allocation11 + $0x68] sm:$0xff]
    %v264 = vld [vmem:[#allocation11 + $0x70] sm:$0xff]
    %v265 = vld [vmem:[#allocation11 + $0x78] sm:$0xff]
    %v266 = vld [vmem:[#allocation11 + $0x80] sm:$0xff]
    %v267 = vld [vmem:[#allocation11 + $0x88] sm:$0xff]
    %v268 = vld [vmem:[#allocation11 + $0x90] sm:$0xff]
    %v269 = vld [vmem:[#allocation11 + $0x98] sm:$0xff]
    %v270 = vld [vmem:[#allocation11 + $0xa0] sm:$0xff]
    %v271 = vld [vmem:[#allocation11 + $0xa8] sm:$0xff]
    %v272 = vld [vmem:[#allocation11 + $0xb0] sm:$0xff]
    %v273 = vld [vmem:[#allocation11 + $0xb8] sm:$0xff]
    %v274 = vld [vmem:[#allocation11 + $0xc0] sm:$0xff]
    %v275 = vld [vmem:[#allocation11 + $0xc8] sm:$0xff]
    %v276 = vld [vmem:[#allocation11 + $0xd0] sm:$0xff]
    %v277 = vld [vmem:[#allocation11 + $0xd8] sm:$0xff]
    %v278 = vld [vmem:[#allocation11 + $0xe0] sm:$0xff]
    %v279 = vld [vmem:[#allocation11 + $0xe8] sm:$0xff]
    %v280 = vld [vmem:[#allocation11 + $0xf0] sm:$0xff]
    %v281 = vld [vmem:[#allocation11 + $0xf8] sm:$0xff]
    %v282 = vld [vmem:[#allocation11 + $0x100] sm:$0xff]
    %v283 = vld [vmem:[#allocation11 + $0x108] sm:$0xff]
    %v284 = vld [vmem:[#allocation11 + $0x110] sm:$0xff]
    %v285 = vld [vmem:[#allocation11 + $0x118] sm:$0xff]
    %v286 = vld [vmem:[#allocation11 + $0x120] sm:$0xff]
    %v287 = vld [vmem:[#allocation11 + $0x128] sm:$0xff]
    %v288 = vld [vmem:[#allocation11 + $0x130] sm:$0xff]
    %v289 = vld [vmem:[#allocation11 + $0x138] sm:$0xff]
    %v290 = vld [vmem:[#allocation11 + $0x140] sm:$0xff]
    %v291 = vld [vmem:[#allocation11 + $0x148] sm:$0xff]
    %v292 = vld [vmem:[#allocation11 + $0x150] sm:$0xff]
    %v293 = vld [vmem:[#allocation11 + $0x158] sm:$0xff]
    %v294 = vld [vmem:[#allocation11 + $0x160] sm:$0xff]
    %v295 = vld [vmem:[#allocation11 + $0x168] sm:$0xff]
    %v296 = vld [vmem:[#allocation11 + $0x170] sm:$0xff]
    %v297 = vld [vmem:[#allocation11 + $0x178] sm:$0xff]
    %v298 = vld [vmem:[#allocation11 + $0x180] sm:$0xff]
    %v299 = vld [vmem:[#allocation11 + $0x188] sm:$0xff]
    %v300 = vld [vmem:[#allocation11 + $0x190] sm:$0xff]
    %v301 = vld [vmem:[#allocation11 + $0x198] sm:$0xff]
    %v302 = vld [vmem:[#allocation11 + $0x1a0] sm:$0xff]
    %v303 = vld [vmem:[#allocation11 + $0x1a8] sm:$0xff]
    %v304 = vld [vmem:[#allocation11 + $0x1b0] sm:$0xff]
    %v305 = vld [vmem:[#allocation11 + $0x1b8] sm:$0xff]
    %v306 = vld [vmem:[#allocation11 + $0x1c0] sm:$0xff]
    %v307 = vld [vmem:[#allocation11 + $0x1c8] sm:$0xff]
    %v308 = vld [vmem:[#allocation11 + $0x1d0] sm:$0xff]
    %v309 = vld [vmem:[#allocation11 + $0x1d8] sm:$0xff]
    %v310 = vld [vmem:[#allocation11 + $0x1e0] sm:$0xff]
    %v311 = vld [vmem:[#allocation11 + $0x1e8] sm:$0xff]
    %v312 = vld [vmem:[#allocation11 + $0x1f0] sm:$0xff]
    %v313 = vld [vmem:[#allocation11 + $0x1f8] sm:$0xff]
    %v314 = vld [vmem:[#allocation11 + $0x200] sm:$0xff]
    %v315 = vld [vmem:[#allocation11 + $0x208] sm:$0xff]
    %v316 = vld [vmem:[#allocation11 + $0x210] sm:$0xff]
    %v317 = vld [vmem:[#allocation11 + $0x218] sm:$0xff]
    %v318 = vld [vmem:[#allocation11 + $0x220] sm:$0xff]
    %v319 = vld [vmem:[#allocation11 + $0x228] sm:$0xff]
    %v320 = vld [vmem:[#allocation11 + $0x230] sm:$0xff]
    %v321 = vld [vmem:[#allocation11 + $0x238] sm:$0xff]
    %v322 = vld [vmem:[#allocation11 + $0x240] sm:$0xff]
    %v323 = vld [vmem:[#allocation11 + $0x248] sm:$0xff]
    %v324 = vld [vmem:[#allocation11 + $0x250] sm:$0xff]
    %v325 = vld [vmem:[#allocation11 + $0x258] sm:$0xff]
    %v326 = vld [vmem:[#allocation11 + $0x260] sm:$0xff]
    %v327 = vld [vmem:[#allocation11 + $0x268] sm:$0xff]
    %v328 = vld [vmem:[#allocation11 + $0x270] sm:$0xff]
    %v329 = vld [vmem:[#allocation11 + $0x278] sm:$0xff]
    %v330 = vld [vmem:[#allocation11 + $0x280] sm:$0xff]
    %v331 = vld [vmem:[#allocation11 + $0x288] sm:$0xff]
    %v332 = vld [vmem:[#allocation11 + $0x290] sm:$0xff]
    %v333 = vld [vmem:[#allocation11 + $0x298] sm:$0xff]
    %v334 = vld [vmem:[#allocation11 + $0x2a0] sm:$0xff]
    %v335 = vld [vmem:[#allocation11 + $0x2a8] sm:$0xff]
    %v336 = vld [vmem:[#allocation11 + $0x2b0] sm:$0xff]
    %v337 = vld [vmem:[#allocation11 + $0x2b8] sm:$0xff]
    %v338 = vld [vmem:[#allocation11 + $0x2c0] sm:$0xff]
    %v339 = vld [vmem:[#allocation11 + $0x2c8] sm:$0xff]
    %v340 = vld [vmem:[#allocation11 + $0x2d0] sm:$0xff]
    %v341 = vld [vmem:[#allocation11 + $0x2d8] sm:$0xff]
    %v342 = vld [vmem:[#allocation11 + $0x2e0] sm:$0xff]
    %v343 = vld [vmem:[#allocation11 + $0x2e8] sm:$0xff]
    %v344 = vld [vmem:[#allocation11 + $0x2f0] sm:$0xff]
    %v345 = vld [vmem:[#allocation11 + $0x2f8] sm:$0xff]
    %v346 = vld [vmem:[#allocation11 + $0x300] sm:$0xff]
    %v347 = vld [vmem:[#allocation11 + $0x308] sm:$0xff]
    %v348 = vld [vmem:[#allocation11 + $0x310] sm:$0xff]
    %v349 = vld [vmem:[#allocation11 + $0x318] sm:$0xff]
    %v350 = vld [vmem:[#allocation11 + $0x320] sm:$0xff]
    %v351 = vld [vmem:[#allocation11 + $0x328] sm:$0xff]
    %v352 = vld [vmem:[#allocation11 + $0x330] sm:$0xff]
    %v353 = vld [vmem:[#allocation11 + $0x338] sm:$0xff]
    %v354 = vld [vmem:[#allocation11 + $0x340] sm:$0xff]
    %v355 = vld [vmem:[#allocation11 + $0x348] sm:$0xff]
    %v356 = vld [vmem:[#allocation11 + $0x350] sm:$0xff]
    %v357 = vld [vmem:[#allocation11 + $0x358] sm:$0xff]
    %v358 = vld [vmem:[#allocation11 + $0x360] sm:$0xff]
    %v359 = vld [vmem:[#allocation11 + $0x368] sm:$0xff]
    %v360 = vld [vmem:[#allocation11 + $0x370] sm:$0xff]
    %v361 = vld [vmem:[#allocation11 + $0x378] sm:$0xff]
    %v362 = vld [vmem:[#allocation11 + $0x380] sm:$0xff]
    %v363 = vld [vmem:[#allocation11 + $0x388] sm:$0xff]
    %v364 = vld [vmem:[#allocation11 + $0x390] sm:$0xff]
    %v365 = vld [vmem:[#allocation11 + $0x398] sm:$0xff]
    %v366 = vld [vmem:[#allocation11 + $0x3a0] sm:$0xff]
    %v367 = vld [vmem:[#allocation11 + $0x3a8] sm:$0xff]
    %v368 = vld [vmem:[#allocation11 + $0x3b0] sm:$0xff]
    %v369 = vld [vmem:[#allocation11 + $0x3b8] sm:$0xff]
    %v370 = vld [vmem:[#allocation11 + $0x3c0] sm:$0xff]
    %v371 = vld [vmem:[#allocation11 + $0x3c8] sm:$0xff]
    %v372 = vld [vmem:[#allocation11 + $0x3d0] sm:$0xff]
    %v373 = vld [vmem:[#allocation11 + $0x3d8] sm:$0xff]
    %v374 = vld [vmem:[#allocation11 + $0x3e0] sm:$0xff]
    %v375 = vld [vmem:[#allocation11 + $0x3e8] sm:$0xff]
    %v376 = vld [vmem:[#allocation11 + $0x3f0] sm:$0xff]
    %v377 = vld [vmem:[#allocation11 + $0x3f8] sm:$0xff]
    %v378 = vld [vmem:[#allocation11 + $0x400] sm:$0xff]
    %v379 = vld [vmem:[#allocation11 + $0x408] sm:$0xff]
    %v380 = vld [vmem:[#allocation11 + $0x410] sm:$0xff]
    %v381 = vld [vmem:[#allocation11 + $0x418] sm:$0xff]
    %v382 = vld [vmem:[#allocation11 + $0x420] sm:$0xff]
    %v383 = vld [vmem:[#allocation11 + $0x428] sm:$0xff]
    %v384 = vld [vmem:[#allocation11 + $0x430] sm:$0xff]
    %v385 = vld [vmem:[#allocation11 + $0x438] sm:$0xff]
    %v386 = vld [vmem:[#allocation11 + $0x440] sm:$0xff]
    %v387 = vld [vmem:[#allocation11 + $0x448] sm:$0xff]
    %v388 = vld [vmem:[#allocation11 + $0x450] sm:$0xff]
    %v389 = vld [vmem:[#allocation11 + $0x458] sm:$0xff]
    %v390 = vld [vmem:[#allocation11 + $0x460] sm:$0xff]
    %v391 = vld [vmem:[#allocation11 + $0x468] sm:$0xff]
    %v392 = vld [vmem:[#allocation11 + $0x470] sm:$0xff]
    %v393 = vld [vmem:[#allocation11 + $0x478] sm:$0xff]
    %v394 = vld [vmem:[#allocation11 + $0x480] sm:$0xff]
    %v395 = vld [vmem:[#allocation11 + $0x488] sm:$0xff]
    %v396 = vld [vmem:[#allocation11 + $0x490] sm:$0xff]
    %v397 = vld [vmem:[#allocation11 + $0x498] sm:$0xff]
    %v398 = vld [vmem:[#allocation11 + $0x4a0] sm:$0xff]
    %v399 = vld [vmem:[#allocation11 + $0x4a8] sm:$0xff]
    %v400 = vld [vmem:[#allocation11 + $0x4b0] sm:$0xff]
    %v401 = vld [vmem:[#allocation11 + $0x4b8] sm:$0xff]
    %v402 = vld [vmem:[#allocation11 + $0x4c0] sm:$0xff]
    %v403 = vld [vmem:[#allocation11 + $0x4c8] sm:$0xff]
    %v404 = vld [vmem:[#allocation11 + $0x4d0] sm:$0xff]
    %v405 = vld [vmem:[#allocation11 + $0x4d8] sm:$0xff]
    %v406 = vld [vmem:[#allocation11 + $0x4e0] sm:$0xff]
    %v407 = vld [vmem:[#allocation11 + $0x4e8] sm:$0xff]
    %v408 = vld [vmem:[#allocation11 + $0x4f0] sm:$0xff]
    %v409 = vld [vmem:[#allocation11 + $0x4f8] sm:$0xff]
    %v410 = vld [vmem:[#allocation11 + $0x500] sm:$0xff]
    %v411 = vld [vmem:[#allocation11 + $0x508] sm:$0xff]
    %v412 = vld [vmem:[#allocation11 + $0x510] sm:$0xff]
    %v413 = vld [vmem:[#allocation11 + $0x518] sm:$0xff]
    %v414 = vld [vmem:[#allocation11 + $0x520] sm:$0xff]
    %v415 = vld [vmem:[#allocation11 + $0x528] sm:$0xff]
    %v416 = vld [vmem:[#allocation11 + $0x530] sm:$0xff]
    %v417 = vld [vmem:[#allocation11 + $0x538] sm:$0xff]
    %v418 = vld [vmem:[#allocation11 + $0x540] sm:$0xff]
    %v419 = vld [vmem:[#allocation11 + $0x548] sm:$0xff]
    %v420 = vld [vmem:[#allocation11 + $0x550] sm:$0xff]
    %v421 = vld [vmem:[#allocation11 + $0x558] sm:$0xff]
    %v422 = vld [vmem:[#allocation11 + $0x560] sm:$0xff]
    %v423 = vld [vmem:[#allocation11 + $0x568] sm:$0xff]
    %v424 = vld [vmem:[#allocation11 + $0x570] sm:$0xff]
    %v425 = vld [vmem:[#allocation11 + $0x578] sm:$0xff]
    %v426 = vld [vmem:[#allocation11 + $0x580] sm:$0xff]
    %v427 = vld [vmem:[#allocation11 + $0x588] sm:$0xff]
    %v428 = vld [vmem:[#allocation11 + $0x590] sm:$0xff]
    %v429 = vld [vmem:[#allocation11 + $0x598] sm:$0xff]
    %v430 = vld [vmem:[#allocation11 + $0x5a0] sm:$0xff]
    %v431 = vld [vmem:[#allocation11 + $0x5a8] sm:$0xff]
    %v432 = vld [vmem:[#allocation11 + $0x5b0] sm:$0xff]
    %v433 = vld [vmem:[#allocation11 + $0x5b8] sm:$0xff]
    %v434 = vld [vmem:[#allocation11 + $0x5c0] sm:$0xff]
    %v435 = vld [vmem:[#allocation11 + $0x5c8] sm:$0xff]
    %v436 = vld [vmem:[#allocation11 + $0x5d0] sm:$0xff]
    %v437 = vld [vmem:[#allocation11 + $0x5d8] sm:$0xff]
    %v438 = vld [vmem:[#allocation11 + $0x5e0] sm:$0xff]
    %v439 = vld [vmem:[#allocation11 + $0x5e8] sm:$0xff]
    %v440 = vld [vmem:[#allocation11 + $0x5f0] sm:$0xff]
    %v441 = vld [vmem:[#allocation11 + $0x5f8] sm:$0xff]
    %v442 = vld [vmem:[%s4] sm:$0x7]
    %v444 = vperm.slane %v442, 0
    %v445 = vperm.slane %v442, 1
    %v446 = vperm.slane %v442, 2
    %450 = vmatpush.msra.mxu0 %v295
    %451 = vmatpush.msra.mxu0 %v292
    %452 = vmatpush.msra.mxu0 %v289
    %453 = vmatpush.msra.mxu0 %v286
    %454 = vmatpush.msra.mxu0 %v283
    %455 = vmatpush.msra.mxu0 %v280
    %456 = vmatpush.msra.mxu0 %v277
    %457 = vmatpush.msra.mxu0 %v274
    %458 = vmatpush.msra.mxu0 %v271
    %459 = vmatpush.msra.mxu0 %v268
    %460 = vmatpush.msra.mxu0 %v265
    %461 = vmatpush.msra.mxu0 %v262
    %462 = vmatpush.msra.mxu0 %v259
    %463 = vmatpush.msra.mxu0 %v256
    %464 = vmatpush.msra.mxu0 %v253
    %465 = vmatpush.msra.mxu0 %v250
    %466 = vmatmul.f32.gmra.mxu0 %v246
    %v467 = vpop.f32.mrf.mxu0
    %v468 = vadd.f32 %v444, %v467
    %469 = vdwg.mxu0
    %470 = vmatpush.msra.mxu0 %v343
    %471 = vmatpush.msra.mxu0 %v340
    %472 = vmatpush.msra.mxu0 %v337
    %473 = vmatpush.msra.mxu0 %v334
    %474 = vmatpush.msra.mxu0 %v331
    %475 = vmatpush.msra.mxu0 %v328
    %476 = vmatpush.msra.mxu0 %v325
    %477 = vmatpush.msra.mxu0 %v322
    %478 = vmatpush.msra.mxu0 %v319
    %479 = vmatpush.msra.mxu0 %v316
    %480 = vmatpush.msra.mxu0 %v313
    %481 = vmatpush.msra.mxu0 %v310
    %482 = vmatpush.msra.mxu0 %v307
    %483 = vmatpush.msra.mxu0 %v304
    %484 = vmatpush.msra.mxu0 %v301
    %485 = vmatpush.msra.mxu0 %v298
    %486 = vmatmul.f32.gmra.mxu0 %v247
    %v487 = vpop.f32.mrf.mxu0
    %v488 = vadd.f32 %v468, %v487
    %489 = vdwg.mxu0
    %490 = vmatpush.msra.mxu0 %v391
    %491 = vmatpush.msra.mxu0 %v388
    %492 = vmatpush.msra.mxu0 %v385
    %493 = vmatpush.msra.mxu0 %v382
    %494 = vmatpush.msra.mxu0 %v379
    %495 = vmatpush.msra.mxu0 %v376
    %496 = vmatpush.msra.mxu0 %v373
    %497 = vmatpush.msra.mxu0 %v370
    %498 = vmatpush.msra.mxu0 %v367
    %499 = vmatpush.msra.mxu0 %v364
    %500 = vmatpush.msra.mxu0 %v361
    %501 = vmatpush.msra.mxu0 %v358
    %502 = vmatpush.msra.mxu0 %v355
    %503 = vmatpush.msra.mxu0 %v352
    %504 = vmatpush.msra.mxu0 %v349
    %505 = vmatpush.msra.mxu0 %v346
    %506 = vmatmul.f32.gmra.mxu0 %v248
    %v507 = vpop.f32.mrf.mxu0
    %v508 = vadd.f32 %v488, %v507
    %509 = vdwg.mxu0
    %510 = vmatpush.msra.mxu0 %v439
    %511 = vmatpush.msra.mxu0 %v436
    %512 = vmatpush.msra.mxu0 %v433
    %513 = vmatpush.msra.mxu0 %v430
    %514 = vmatpush.msra.mxu0 %v427
    %515 = vmatpush.msra.mxu0 %v424
    %516 = vmatpush.msra.mxu0 %v421
    %517 = vmatpush.msra.mxu0 %v418
    %518 = vmatpush.msra.mxu0 %v415
    %519 = vmatpush.msra.mxu0 %v412
    %520 = vmatpush.msra.mxu0 %v409
    %521 = vmatpush.msra.mxu0 %v406
    %522 = vmatpush.msra.mxu0 %v403
    %523 = vmatpush.msra.mxu0 %v400
    %524 = vmatpush.msra.mxu0 %v397
    %525 = vmatpush.msra.mxu0 %v394
    %526 = vmatmul.f32.gmra.mxu0 %v249
    %v527 = vpop.f32.mrf.mxu0
    %v528 = vadd.f32 %v508, %v527
    %529 = vdwg.mxu0
    %530 = vmatpush.msra.mxu0 %v296
    %531 = vmatpush.msra.mxu0 %v293
    %532 = vmatpush.msra.mxu0 %v290
    %533 = vmatpush.msra.mxu0 %v287
    %534 = vmatpush.msra.mxu0 %v284
    %535 = vmatpush.msra.mxu0 %v281
    %536 = vmatpush.msra.mxu0 %v278
    %537 = vmatpush.msra.mxu0 %v275
    %538 = vmatpush.msra.mxu0 %v272
    %539 = vmatpush.msra.mxu0 %v269
    %540 = vmatpush.msra.mxu0 %v266
    %541 = vmatpush.msra.mxu0 %v263
    %542 = vmatpush.msra.mxu0 %v260
    %543 = vmatpush.msra.mxu0 %v257
    %544 = vmatpush.msra.mxu0 %v254
    %545 = vmatpush.msra.mxu0 %v251
    %546 = vmatmul.f32.gmra.mxu0 %v246
    %v547 = vpop.f32.mrf.mxu0
    %v548 = vadd.f32 %v445, %v547
    %549 = vdwg.mxu0
    %550 = vmatpush.msra.mxu0 %v344
    %551 = vmatpush.msra.mxu0 %v341
    %552 = vmatpush.msra.mxu0 %v338
    %553 = vmatpush.msra.mxu0 %v335
    %554 = vmatpush.msra.mxu0 %v332
    %555 = vmatpush.msra.mxu0 %v329
    %556 = vmatpush.msra.mxu0 %v326
    %557 = vmatpush.msra.mxu0 %v323
    %558 = vmatpush.msra.mxu0 %v320
    %559 = vmatpush.msra.mxu0 %v317
    %560 = vmatpush.msra.mxu0 %v314
    %561 = vmatpush.msra.mxu0 %v311
    %562 = vmatpush.msra.mxu0 %v308
    %563 = vmatpush.msra.mxu0 %v305
    %564 = vmatpush.msra.mxu0 %v302
    %565 = vmatpush.msra.mxu0 %v299
    %566 = vmatmul.f32.gmra.mxu0 %v247
    %v567 = vpop.f32.mrf.mxu0
    %v568 = vadd.f32 %v548, %v567
    %569 = vdwg.mxu0
    %570 = vmatpush.msra.mxu0 %v392
    %571 = vmatpush.msra.mxu0 %v389
    %572 = vmatpush.msra.mxu0 %v386
    %573 = vmatpush.msra.mxu0 %v383
    %574 = vmatpush.msra.mxu0 %v380
    %575 = vmatpush.msra.mxu0 %v377
    %576 = vmatpush.msra.mxu0 %v374
    %577 = vmatpush.msra.mxu0 %v371
    %578 = vmatpush.msra.mxu0 %v368
    %579 = vmatpush.msra.mxu0 %v365
    %580 = vmatpush.msra.mxu0 %v362
    %581 = vmatpush.msra.mxu0 %v359
    %582 = vmatpush.msra.mxu0 %v356
    %583 = vmatpush.msra.mxu0 %v353
    %584 = vmatpush.msra.mxu0 %v350
    %585 = vmatpush.msra.mxu0 %v347
    %586 = vmatmul.f32.gmra.mxu0 %v248
    %v587 = vpop.f32.mrf.mxu0
    %v588 = vadd.f32 %v568, %v587
    %589 = vdwg.mxu0
    %590 = vmatpush.msra.mxu0 %v440
    %591 = vmatpush.msra.mxu0 %v437
    %592 = vmatpush.msra.mxu0 %v434
    %593 = vmatpush.msra.mxu0 %v431
    %594 = vmatpush.msra.mxu0 %v428
    %595 = vmatpush.msra.mxu0 %v425
    %596 = vmatpush.msra.mxu0 %v422
    %597 = vmatpush.msra.mxu0 %v419
    %598 = vmatpush.msra.mxu0 %v416
    %599 = vmatpush.msra.mxu0 %v413
    %600 = vmatpush.msra.mxu0 %v410
    %601 = vmatpush.msra.mxu0 %v407
    %602 = vmatpush.msra.mxu0 %v404
    %603 = vmatpush.msra.mxu0 %v401
    %604 = vmatpush.msra.mxu0 %v398
    %605 = vmatpush.msra.mxu0 %v395
    %606 = vmatmul.f32.gmra.mxu0 %v249
    %v607 = vpop.f32.mrf.mxu0
    %v608 = vadd.f32 %v588, %v607
    %609 = vdwg.mxu0
    %610 = vmatpush.msra.mxu0 %v297
    %611 = vmatpush.msra.mxu0 %v294
    %612 = vmatpush.msra.mxu0 %v291
    %613 = vmatpush.msra.mxu0 %v288
    %614 = vmatpush.msra.mxu0 %v285
    %615 = vmatpush.msra.mxu0 %v282
    %616 = vmatpush.msra.mxu0 %v279
    %617 = vmatpush.msra.mxu0 %v276
    %618 = vmatpush.msra.mxu0 %v273
    %619 = vmatpush.msra.mxu0 %v270
    %620 = vmatpush.msra.mxu0 %v267
    %621 = vmatpush.msra.mxu0 %v264
    %622 = vmatpush.msra.mxu0 %v261
    %623 = vmatpush.msra.mxu0 %v258
    %624 = vmatpush.msra.mxu0 %v255
    %625 = vmatpush.msra.mxu0 %v252
    %626 = vmatmul.f32.gmra.mxu0 %v246
    %v627 = vpop.f32.mrf.mxu0
    %v628 = vadd.f32 %v446, %v627
    %629 = vdwg.mxu0
    %630 = vmatpush.msra.mxu0 %v345
    %631 = vmatpush.msra.mxu0 %v342
    %632 = vmatpush.msra.mxu0 %v339
    %633 = vmatpush.msra.mxu0 %v336
    %634 = vmatpush.msra.mxu0 %v333
    %635 = vmatpush.msra.mxu0 %v330
    %636 = vmatpush.msra.mxu0 %v327
    %637 = vmatpush.msra.mxu0 %v324
    %638 = vmatpush.msra.mxu0 %v321
    %639 = vmatpush.msra.mxu0 %v318
    %640 = vmatpush.msra.mxu0 %v315
    %641 = vmatpush.msra.mxu0 %v312
    %642 = vmatpush.msra.mxu0 %v309
    %643 = vmatpush.msra.mxu0 %v306
    %644 = vmatpush.msra.mxu0 %v303
    %645 = vmatpush.msra.mxu0 %v300
    %646 = vmatmul.f32.gmra.mxu0 %v247
    %v647 = vpop.f32.mrf.mxu0
    %v648 = vadd.f32 %v628, %v647
    %649 = vdwg.mxu0
    %650 = vmatpush.msra.mxu0 %v393
    %651 = vmatpush.msra.mxu0 %v390
    %652 = vmatpush.msra.mxu0 %v387
    %653 = vmatpush.msra.mxu0 %v384
    %654 = vmatpush.msra.mxu0 %v381
    %655 = vmatpush.msra.mxu0 %v378
    %656 = vmatpush.msra.mxu0 %v375
    %657 = vmatpush.msra.mxu0 %v372
    %658 = vmatpush.msra.mxu0 %v369
    %659 = vmatpush.msra.mxu0 %v366
    %660 = vmatpush.msra.mxu0 %v363
    %661 = vmatpush.msra.mxu0 %v360
    %662 = vmatpush.msra.mxu0 %v357
    %663 = vmatpush.msra.mxu0 %v354
    %664 = vmatpush.msra.mxu0 %v351
    %665 = vmatpush.msra.mxu0 %v348
    %666 = vmatmul.f32.gmra.mxu0 %v248
    %v667 = vpop.f32.mrf.mxu0
    %v668 = vadd.f32 %v648, %v667
    %669 = vdwg.mxu0
    %670 = vmatpush.msra.mxu0 %v441
    %671 = vmatpush.msra.mxu0 %v438
    %672 = vmatpush.msra.mxu0 %v435
    %673 = vmatpush.msra.mxu0 %v432
    %674 = vmatpush.msra.mxu0 %v429
    %675 = vmatpush.msra.mxu0 %v426
    %676 = vmatpush.msra.mxu0 %v423
    %677 = vmatpush.msra.mxu0 %v420
    %678 = vmatpush.msra.mxu0 %v417
    %679 = vmatpush.msra.mxu0 %v414
    %680 = vmatpush.msra.mxu0 %v411
    %681 = vmatpush.msra.mxu0 %v408
    %682 = vmatpush.msra.mxu0 %v405
    %683 = vmatpush.msra.mxu0 %v402
    %684 = vmatpush.msra.mxu0 %v399
    %685 = vmatpush.msra.mxu0 %v396
    %686 = vmatmul.f32.gmra.mxu0 %v249
    %v687 = vpop.f32.mrf.mxu0
    %v688 = vadd.f32 %v668, %v687
    %689 = vdwg.mxu0
    %690 = vst [vmem:[#allocation3] sm:$0xff] %v528
    %691 = vst [vmem:[#allocation3 + $0x8] sm:$0xff] %v608
    %692 = vst [vmem:[#allocation3 + $0x10] sm:$0xff] %v688
    %v693 = vld [vmem:[#allocation13] sm:$0xff]
    %v694 = vld [vmem:[#allocation13 + $0x8] sm:$0xff]
    %v695 = vld [vmem:[#allocation13 + $0x10] sm:$0xff]
    %v696 = vld [vmem:[#allocation13 + $0x18] sm:$0xff]
    %v697 = vld [vmem:[#allocation13 + $0x20] sm:$0xff]
    %v698 = vld [vmem:[#allocation13 + $0x28] sm:$0xff]
    %v699 = vld [vmem:[#allocation13 + $0x30] sm:$0xff]
    %v700 = vld [vmem:[#allocation13 + $0x38] sm:$0xff]
    %v701 = vld [vmem:[#allocation13 + $0x40] sm:$0xff]
    %v702 = vld [vmem:[#allocation13 + $0x48] sm:$0xff]
    %v703 = vld [vmem:[#allocation13 + $0x50] sm:$0xff]
    %v704 = vld [vmem:[#allocation13 + $0x58] sm:$0xff]
    %v705 = vld [vmem:[#allocation13 + $0x60] sm:$0xff]
    %v706 = vld [vmem:[#allocation13 + $0x68] sm:$0xff]
    %v707 = vld [vmem:[#allocation13 + $0x70] sm:$0xff]
    %v708 = vld [vmem:[#allocation13 + $0x78] sm:$0xff]
    %v709 = vld [vmem:[#allocation13 + $0x80] sm:$0xff]
    %v710 = vld [vmem:[#allocation13 + $0x88] sm:$0xff]
    %v711 = vld [vmem:[#allocation13 + $0x90] sm:$0xff]
    %v712 = vld [vmem:[#allocation13 + $0x98] sm:$0xff]
    %v713 = vld [vmem:[#allocation13 + $0xa0] sm:$0xff]
    %v714 = vld [vmem:[#allocation13 + $0xa8] sm:$0xff]
    %v715 = vld [vmem:[#allocation13 + $0xb0] sm:$0xff]
    %v716 = vld [vmem:[#allocation13 + $0xb8] sm:$0xff]
    %v717 = vld [vmem:[#allocation13 + $0xc0] sm:$0xff]
    %v718 = vld [vmem:[#allocation13 + $0xc8] sm:$0xff]
    %v719 = vld [vmem:[#allocation13 + $0xd0] sm:$0xff]
    %v720 = vld [vmem:[#allocation13 + $0xd8] sm:$0xff]
    %v721 = vld [vmem:[#allocation13 + $0xe0] sm:$0xff]
    %v722 = vld [vmem:[#allocation13 + $0xe8] sm:$0xff]
    %v723 = vld [vmem:[#allocation13 + $0xf0] sm:$0xff]
    %v724 = vld [vmem:[#allocation13 + $0xf8] sm:$0xff]
    %v725 = vld [vmem:[#allocation13 + $0x100] sm:$0xff]
    %v726 = vld [vmem:[#allocation13 + $0x108] sm:$0xff]
    %v727 = vld [vmem:[#allocation13 + $0x110] sm:$0xff]
    %v728 = vld [vmem:[#allocation13 + $0x118] sm:$0xff]
    %v729 = vld [vmem:[#allocation13 + $0x120] sm:$0xff]
    %v730 = vld [vmem:[#allocation13 + $0x128] sm:$0xff]
    %v731 = vld [vmem:[#allocation13 + $0x130] sm:$0xff]
    %v732 = vld [vmem:[#allocation13 + $0x138] sm:$0xff]
    %v733 = vld [vmem:[#allocation13 + $0x140] sm:$0xff]
    %v734 = vld [vmem:[#allocation13 + $0x148] sm:$0xff]
    %v735 = vld [vmem:[#allocation13 + $0x150] sm:$0xff]
    %v736 = vld [vmem:[#allocation13 + $0x158] sm:$0xff]
    %v737 = vld [vmem:[#allocation13 + $0x160] sm:$0xff]
    %v738 = vld [vmem:[#allocation13 + $0x168] sm:$0xff]
    %v739 = vld [vmem:[#allocation13 + $0x170] sm:$0xff]
    %v740 = vld [vmem:[#allocation13 + $0x178] sm:$0xff]
    %v741 = vld [vmem:[%s6] sm:$0x1]
    %v742 = vld [vmem:[%s1] sm:$0x1]
    %743 = vmatpush.msra.mxu0 %v738
    %744 = vmatpush.msra.mxu0 %v735
    %745 = vmatpush.msra.mxu0 %v732
    %746 = vmatpush.msra.mxu0 %v729
    %747 = vmatpush.msra.mxu0 %v726
    %748 = vmatpush.msra.mxu0 %v723
    %749 = vmatpush.msra.mxu0 %v720
    %750 = vmatpush.msra.mxu0 %v717
    %751 = vmatpush.msra.mxu0 %v714
    %752 = vmatpush.msra.mxu0 %v711
    %753 = vmatpush.msra.mxu0 %v708
    %754 = vmatpush.msra.mxu0 %v705
    %755 = vmatpush.msra.mxu0 %v702
    %756 = vmatpush.msra.mxu0 %v699
    %757 = vmatpush.msra.mxu0 %v696
    %758 = vmatpush.msra.mxu0 %v693
    %759 = vmatmul.f32.gmra.mxu0 %v742
    %v760 = vpop.f32.mrf.mxu0
    %v761 = vadd.f32 0.0, %v760
    %762 = vdwg.mxu0
    %763 = vmatpush.msra.mxu0 %v739
    %764 = vmatpush.msra.mxu0 %v736
    %765 = vmatpush.msra.mxu0 %v733
    %766 = vmatpush.msra.mxu0 %v730
    %767 = vmatpush.msra.mxu0 %v727
    %768 = vmatpush.msra.mxu0 %v724
    %769 = vmatpush.msra.mxu0 %v721
    %770 = vmatpush.msra.mxu0 %v718
    %771 = vmatpush.msra.mxu0 %v715
    %772 = vmatpush.msra.mxu0 %v712
    %773 = vmatpush.msra.mxu0 %v709
    %774 = vmatpush.msra.mxu0 %v706
    %775 = vmatpush.msra.mxu0 %v703
    %776 = vmatpush.msra.mxu0 %v700
    %777 = vmatpush.msra.mxu0 %v697
    %778 = vmatpush.msra.mxu0 %v694
    %779 = vmatmul.f32.gmra.mxu0 %v742
    %v780 = vpop.f32.mrf.mxu0
    %v781 = vadd.f32 0.0, %v780
    %782 = vdwg.mxu0
    %783 = vmatpush.msra.mxu0 %v740
    %784 = vmatpush.msra.mxu0 %v737
    %785 = vmatpush.msra.mxu0 %v734
    %786 = vmatpush.msra.mxu0 %v731
    %787 = vmatpush.msra.mxu0 %v728
    %788 = vmatpush.msra.mxu0 %v725
    %789 = vmatpush.msra.mxu0 %v722
    %790 = vmatpush.msra.mxu0 %v719
    %791 = vmatpush.msra.mxu0 %v716
    %792 = vmatpush.msra.mxu0 %v713
    %793 = vmatpush.msra.mxu0 %v710
    %794 = vmatpush.msra.mxu0 %v707
    %795 = vmatpush.msra.mxu0 %v704
    %796 = vmatpush.msra.mxu0 %v701
    %797 = vmatpush.msra.mxu0 %v698
    %798 = vmatpush.msra.mxu0 %v695
    %799 = vmatmul.f32.gmra.mxu0 %v742
    %v800 = vpop.f32.mrf.mxu0
    %v801 = vadd.f32 0.0, %v800
    %802 = vdwg.mxu0
    %v803 = vld [vmem:[#allocation3] ss:$8 sm:$0x7]
    %v804 = vadd.f32 %v803, %v761
    %v805 = vxor.u32 %v804, 2147483648
    %v806 = vmul.f32 %v805, 1.442695
    %v807 = vpow.pop %v806
    %v808 = vadd.f32 %v807, 1.0
    %v809 = vrcp.pop %v808
    %v810 = vmul.f32 %v808, %v809
    %v811 = vsub.f32 1.0, %v810
    %v812 = vmul.f32 %v809, %v811
    %v813 = vadd.f32 %v809, %v812
    %vm814 = vweird.f32 %v808
    %vm815 = vweird.f32 %v809
    %vm816 = vmor %vm814, %vm815
    %v817 = vsel %vm816, %v809, %v813
    %v818 = vand.u32 2147483647, %v808
    %vm819 = vcmp.eq.f32.partialorder %v818, 8.507059e+37
    %v820 = vand.u32 %v808, 2147483648
    %v821 = vor.u32 1.1754944e-38, %v820
    %v822 = vsel %vm819, %v821, %v817
    %v823 = vmul.f32 1.0, %v822
    %v825 = vrot.slane %v803, 1
    %v827 = vadd.f32 %v825, %v781
    %v828 = vxor.u32 %v827, 2147483648
    %v829 = vmul.f32 %v828, 1.442695
    %v830 = vpow.pop %v829
    %v831 = vadd.f32 %v830, 1.0
    %v832 = vrcp.pop %v831
    %v833 = vmul.f32 %v831, %v832
    %v834 = vsub.f32 1.0, %v833
    %v835 = vmul.f32 %v832, %v834
    %v836 = vadd.f32 %v832, %v835
    %vm837 = vweird.f32 %v831
    %vm838 = vweird.f32 %v832
    %vm839 = vmor %vm837, %vm838
    %v840 = vsel %vm839, %v832, %v836
    %v841 = vand.u32 2147483647, %v831
    %vm842 = vcmp.eq.f32.partialorder %v841, 8.507059e+37
    %v843 = vand.u32 %v831, 2147483648
    %v844 = vor.u32 1.1754944e-38, %v843
    %v845 = vsel %vm842, %v844, %v840
    %v846 = vmul.f32 1.0, %v845
    %v847 = vadd.f32 %v801, %v741
    %v848 = vmul.f32 %v823, %v847
    %v849 = vrot.slane %v803, 2
    %v851 = vadd.f32 %v849, %v848
    %v852 = vtanh.pop %v851
    %v853 = vsub.f32 1.0, %v846
    %v854 = vmul.f32 %v853, %v852
    %v855 = vmul.f32 %v846, %v742
    %v856 = vadd.f32 %v854, %v855
    %857 = vst [vmem:[#allocation4] sm:$0x1] %v856
    %858 = vst [vmem:[#allocation5 + $0x7] sm:$0x1] %v856
    %859 = vmatpush.msra.mxu0 %v738
    %860 = vmatpush.msra.mxu0 %v735
    %861 = vmatpush.msra.mxu0 %v732
    %862 = vmatpush.msra.mxu0 %v729
    %863 = vmatpush.msra.mxu0 %v726
    %864 = vmatpush.msra.mxu0 %v723
    %865 = vmatpush.msra.mxu0 %v720
    %866 = vmatpush.msra.mxu0 %v717
    %867 = vmatpush.msra.mxu0 %v714
    %868 = vmatpush.msra.mxu0 %v711
    %869 = vmatpush.msra.mxu0 %v708
    %870 = vmatpush.msra.mxu0 %v705
    %871 = vmatpush.msra.mxu0 %v702
    %872 = vmatpush.msra.mxu0 %v699
    %873 = vmatpush.msra.mxu0 %v696
    %874 = vmatpush.msra.mxu0 %v693
    %875 = vmatmul.f32.gmra.mxu0 %v856
    %v876 = vpop.f32.mrf.mxu0
    %v877 = vadd.f32 0.0, %v876
    %878 = vdwg.mxu0
    %879 = vmatpush.msra.mxu0 %v739
    %880 = vmatpush.msra.mxu0 %v736
    %881 = vmatpush.msra.mxu0 %v733
    %882 = vmatpush.msra.mxu0 %v730
    %883 = vmatpush.msra.mxu0 %v727
    %884 = vmatpush.msra.mxu0 %v724
    %885 = vmatpush.msra.mxu0 %v721
    %886 = vmatpush.msra.mxu0 %v718
    %887 = vmatpush.msra.mxu0 %v715
    %888 = vmatpush.msra.mxu0 %v712
    %889 = vmatpush.msra.mxu0 %v709
    %890 = vmatpush.msra.mxu0 %v706
    %891 = vmatpush.msra.mxu0 %v703
    %892 = vmatpush.msra.mxu0 %v700
    %893 = vmatpush.msra.mxu0 %v697
    %894 = vmatpush.msra.mxu0 %v694
    %895 = vmatmul.f32.gmra.mxu0 %v856
    %v896 = vpop.f32.mrf.mxu0
    %v897 = vadd.f32 0.0, %v896
    %898 = vdwg.mxu0
    %899 = vmatpush.msra.mxu0 %v740
    %900 = vmatpush.msra.mxu0 %v737
    %901 = vmatpush.msra.mxu0 %v734
    %902 = vmatpush.msra.mxu0 %v731
    %903 = vmatpush.msra.mxu0 %v728
    %904 = vmatpush.msra.mxu0 %v725
    %905 = vmatpush.msra.mxu0 %v722
    %906 = vmatpush.msra.mxu0 %v719
    %907 = vmatpush.msra.mxu0 %v716
    %908 = vmatpush.msra.mxu0 %v713
    %909 = vmatpush.msra.mxu0 %v710
    %910 = vmatpush.msra.mxu0 %v707
    %911 = vmatpush.msra.mxu0 %v704
    %912 = vmatpush.msra.mxu0 %v701
    %913 = vmatpush.msra.mxu0 %v698
    %914 = vmatpush.msra.mxu0 %v695
    %915 = vmatmul.f32.gmra.mxu0 %v856
    %v916 = vpop.f32.mrf.mxu0
    %v917 = vadd.f32 0.0, %v916
    %918 = vdwg.mxu0
    %s919 = scalar_lea.vmem [#allocation3], 1
    %v920 = vld [vmem:[%s919] ss:$8 sm:$0x7]
    %v921 = vadd.f32 %v920, %v877
    %v922 = vxor.u32 %v921, 2147483648
    %v923 = vmul.f32 %v922, 1.442695
    %v924 = vpow.pop %v923
    %v925 = vadd.f32 %v924, 1.0
    %v926 = vrcp.pop %v925
    %v927 = vmul.f32 %v925, %v926
    %v928 = vsub.f32 1.0, %v927
    %v929 = vmul.f32 %v926, %v928
    %v930 = vadd.f32 %v926, %v929
    %vm931 = vweird.f32 %v925
    %vm932 = vweird.f32 %v926
    %vm933 = vmor %vm931, %vm932
    %v934 = vsel %vm933, %v926, %v930
    %v935 = vand.u32 2147483647, %v925
    %vm936 = vcmp.eq.f32.partialorder %v935, 8.507059e+37
    %v937 = vand.u32 %v925, 2147483648
    %v938 = vor.u32 1.1754944e-38, %v937
    %v939 = vsel %vm936, %v938, %v934
    %v940 = vmul.f32 1.0, %v939
    %v942 = vrot.slane %v920, 1
    %v944 = vadd.f32 %v942, %v897
    %v945 = vxor.u32 %v944, 2147483648
    %v946 = vmul.f32 %v945, 1.442695
    %v947 = vpow.pop %v946
    %v948 = vadd.f32 %v947, 1.0
    %v949 = vrcp.pop %v948
    %v950 = vmul.f32 %v948, %v949
    %v951 = vsub.f32 1.0, %v950
    %v952 = vmul.f32 %v949, %v951
    %v953 = vadd.f32 %v949, %v952
    %vm954 = vweird.f32 %v948
    %vm955 = vweird.f32 %v949
    %vm956 = vmor %vm954, %vm955
    %v957 = vsel %vm956, %v949, %v953
    %v958 = vand.u32 2147483647, %v948
    %vm959 = vcmp.eq.f32.partialorder %v958, 8.507059e+37
    %v960 = vand.u32 %v948, 2147483648
    %v961 = vor.u32 1.1754944e-38, %v960
    %v962 = vsel %vm959, %v961, %v957
    %v963 = vmul.f32 1.0, %v962
    %v964 = vadd.f32 %v917, %v741
    %v965 = vmul.f32 %v940, %v964
    %v966 = vrot.slane %v920, 2
    %v968 = vadd.f32 %v966, %v965
    %v969 = vtanh.pop %v968
    %v970 = vsub.f32 1.0, %v963
    %v971 = vmul.f32 %v970, %v969
    %v972 = vmul.f32 %v963, %v856
    %v973 = vadd.f32 %v971, %v972
    %974 = vst [vmem:[#allocation4 + $0x1] sm:$0x1] %v973
    %975 = vst [vmem:[#allocation5 + $0x6] sm:$0x1] %v973
    %976 = vmatpush.msra.mxu0 %v738
    %977 = vmatpush.msra.mxu0 %v735
    %978 = vmatpush.msra.mxu0 %v732
    %979 = vmatpush.msra.mxu0 %v729
    %980 = vmatpush.msra.mxu0 %v726
    %981 = vmatpush.msra.mxu0 %v723
    %982 = vmatpush.msra.mxu0 %v720
    %983 = vmatpush.msra.mxu0 %v717
    %984 = vmatpush.msra.mxu0 %v714
    %985 = vmatpush.msra.mxu0 %v711
    %986 = vmatpush.msra.mxu0 %v708
    %987 = vmatpush.msra.mxu0 %v705
    %988 = vmatpush.msra.mxu0 %v702
    %989 = vmatpush.msra.mxu0 %v699
    %990 = vmatpush.msra.mxu0 %v696
    %991 = vmatpush.msra.mxu0 %v693
    %992 = vmatmul.f32.gmra.mxu0 %v973
    %v993 = vpop.f32.mrf.mxu0
    %v994 = vadd.f32 0.0, %v993
    %995 = vdwg.mxu0
    %996 = vmatpush.msra.mxu0 %v739
    %997 = vmatpush.msra.mxu0 %v736
    %998 = vmatpush.msra.mxu0 %v733
    %999 = vmatpush.msra.mxu0 %v730
    %1000 = vmatpush.msra.mxu0 %v727
    %1001 = vmatpush.msra.mxu0 %v724
    %1002 = vmatpush.msra.mxu0 %v721
    %1003 = vmatpush.msra.mxu0 %v718
    %1004 = vmatpush.msra.mxu0 %v715
    %1005 = vmatpush.msra.mxu0 %v712
    %1006 = vmatpush.msra.mxu0 %v709
    %1007 = vmatpush.msra.mxu0 %v706
    %1008 = vmatpush.msra.mxu0 %v703
    %1009 = vmatpush.msra.mxu0 %v700
    %1010 = vmatpush.msra.mxu0 %v697
    %1011 = vmatpush.msra.mxu0 %v694
    %1012 = vmatmul.f32.gmra.mxu0 %v973
    %v1013 = vpop.f32.mrf.mxu0
    %v1014 = vadd.f32 0.0, %v1013
    %1015 = vdwg.mxu0
    %1016 = vmatpush.msra.mxu0 %v740
    %1017 = vmatpush.msra.mxu0 %v737
    %1018 = vmatpush.msra.mxu0 %v734
    %1019 = vmatpush.msra.mxu0 %v731
    %1020 = vmatpush.msra.mxu0 %v728
    %1021 = vmatpush.msra.mxu0 %v725
    %1022 = vmatpush.msra.mxu0 %v722
    %1023 = vmatpush.msra.mxu0 %v719
    %1024 = vmatpush.msra.mxu0 %v716
    %1025 = vmatpush.msra.mxu0 %v713
    %1026 = vmatpush.msra.mxu0 %v710
    %1027 = vmatpush.msra.mxu0 %v707
    %1028 = vmatpush.msra.mxu0 %v704
    %1029 = vmatpush.msra.mxu0 %v701
    %1030 = vmatpush.msra.mxu0 %v698
    %1031 = vmatpush.msra.mxu0 %v695
    %1032 = vmatmul.f32.gmra.mxu0 %v973
    %v1033 = vpop.f32.mrf.mxu0
    %v1034 = vadd.f32 0.0, %v1033
    %1035 = vdwg.mxu0
    %s1036 = scalar_lea.vmem [#allocation3], 2
    %v1037 = vld [vmem:[%s1036] ss:$8 sm:$0x7]
    %v1038 = vadd.f32 %v1037, %v994
    %v1039 = vxor.u32 %v1038, 2147483648
    %v1040 = vmul.f32 %v1039, 1.442695
    %v1041 = vpow.pop %v1040
    %v1042 = vadd.f32 %v1041, 1.0
    %v1043 = vrcp.pop %v1042
    %v1044 = vmul.f32 %v1042, %v1043
    %v1045 = vsub.f32 1.0, %v1044
    %v1046 = vmul.f32 %v1043, %v1045
    %v1047 = vadd.f32 %v1043, %v1046
    %vm1048 = vweird.f32 %v1042
    %vm1049 = vweird.f32 %v1043
    %vm1050 = vmor %vm1048, %vm1049
    %v1051 = vsel %vm1050, %v1043, %v1047
    %v1052 = vand.u32 2147483647, %v1042
    %vm1053 = vcmp.eq.f32.partialorder %v1052, 8.507059e+37
    %v1054 = vand.u32 %v1042, 2147483648
    %v1055 = vor.u32 1.1754944e-38, %v1054
    %v1056 = vsel %vm1053, %v1055, %v1051
    %v1057 = vmul.f32 1.0, %v1056
    %v1059 = vrot.slane %v1037, 1
    %v1061 = vadd.f32 %v1059, %v1014
    %v1062 = vxor.u32 %v1061, 2147483648
    %v1063 = vmul.f32 %v1062, 1.442695
    %v1064 = vpow.pop %v1063
    %v1065 = vadd.f32 %v1064, 1.0
    %v1066 = vrcp.pop %v1065
    %v1067 = vmul.f32 %v1065, %v1066
    %v1068 = vsub.f32 1.0, %v1067
    %v1069 = vmul.f32 %v1066, %v1068
    %v1070 = vadd.f32 %v1066, %v1069
    %vm1071 = vweird.f32 %v1065
    %vm1072 = vweird.f32 %v1066
    %vm1073 = vmor %vm1071, %vm1072
    %v1074 = vsel %vm1073, %v1066, %v1070
    %v1075 = vand.u32 2147483647, %v1065
    %vm1076 = vcmp.eq.f32.partialorder %v1075, 8.507059e+37
    %v1077 = vand.u32 %v1065, 2147483648
    %v1078 = vor.u32 1.1754944e-38, %v1077
    %v1079 = vsel %vm1076, %v1078, %v1074
    %v1080 = vmul.f32 1.0, %v1079
    %v1081 = vadd.f32 %v1034, %v741
    %v1082 = vmul.f32 %v1057, %v1081
    %v1083 = vrot.slane %v1037, 2
    %v1085 = vadd.f32 %v1083, %v1082
    %v1086 = vtanh.pop %v1085
    %v1087 = vsub.f32 1.0, %v1080
    %v1088 = vmul.f32 %v1087, %v1086
    %v1089 = vmul.f32 %v1080, %v973
    %v1090 = vadd.f32 %v1088, %v1089
    %1091 = vst [vmem:[#allocation4 + $0x2] sm:$0x1] %v1090
    %1092 = vst [vmem:[#allocation5 + $0x5] sm:$0x1] %v1090
    %1093 = vmatpush.msra.mxu0 %v738
    %1094 = vmatpush.msra.mxu0 %v735
    %1095 = vmatpush.msra.mxu0 %v732
    %1096 = vmatpush.msra.mxu0 %v729
    %1097 = vmatpush.msra.mxu0 %v726
    %1098 = vmatpush.msra.mxu0 %v723
    %1099 = vmatpush.msra.mxu0 %v720
    %1100 = vmatpush.msra.mxu0 %v717
    %1101 = vmatpush.msra.mxu0 %v714
    %1102 = vmatpush.msra.mxu0 %v711
    %1103 = vmatpush.msra.mxu0 %v708
    %1104 = vmatpush.msra.mxu0 %v705
    %1105 = vmatpush.msra.mxu0 %v702
    %1106 = vmatpush.msra.mxu0 %v699
    %1107 = vmatpush.msra.mxu0 %v696
    %1108 = vmatpush.msra.mxu0 %v693
    %1109 = vmatmul.f32.gmra.mxu0 %v1090
    %v1110 = vpop.f32.mrf.mxu0
    %v1111 = vadd.f32 0.0, %v1110
    %1112 = vdwg.mxu0
    %1113 = vmatpush.msra.mxu0 %v739
    %1114 = vmatpush.msra.mxu0 %v736
    %1115 = vmatpush.msra.mxu0 %v733
    %1116 = vmatpush.msra.mxu0 %v730
    %1117 = vmatpush.msra.mxu0 %v727
    %1118 = vmatpush.msra.mxu0 %v724
    %1119 = vmatpush.msra.mxu0 %v721
    %1120 = vmatpush.msra.mxu0 %v718
    %1121 = vmatpush.msra.mxu0 %v715
    %1122 = vmatpush.msra.mxu0 %v712
    %1123 = vmatpush.msra.mxu0 %v709
    %1124 = vmatpush.msra.mxu0 %v706
    %1125 = vmatpush.msra.mxu0 %v703
    %1126 = vmatpush.msra.mxu0 %v700
    %1127 = vmatpush.msra.mxu0 %v697
    %1128 = vmatpush.msra.mxu0 %v694
    %1129 = vmatmul.f32.gmra.mxu0 %v1090
    %v1130 = vpop.f32.mrf.mxu0
    %v1131 = vadd.f32 0.0, %v1130
    %1132 = vdwg.mxu0
    %1133 = vmatpush.msra.mxu0 %v740
    %1134 = vmatpush.msra.mxu0 %v737
    %1135 = vmatpush.msra.mxu0 %v734
    %1136 = vmatpush.msra.mxu0 %v731
    %1137 = vmatpush.msra.mxu0 %v728
    %1138 = vmatpush.msra.mxu0 %v725
    %1139 = vmatpush.msra.mxu0 %v722
    %1140 = vmatpush.msra.mxu0 %v719
    %1141 = vmatpush.msra.mxu0 %v716
    %1142 = vmatpush.msra.mxu0 %v713
    %1143 = vmatpush.msra.mxu0 %v710
    %1144 = vmatpush.msra.mxu0 %v707
    %1145 = vmatpush.msra.mxu0 %v704
    %1146 = vmatpush.msra.mxu0 %v701
    %1147 = vmatpush.msra.mxu0 %v698
    %1148 = vmatpush.msra.mxu0 %v695
    %1149 = vmatmul.f32.gmra.mxu0 %v1090
    %v1150 = vpop.f32.mrf.mxu0
    %v1151 = vadd.f32 0.0, %v1150
    %1152 = vdwg.mxu0
    %s1153 = scalar_lea.vmem [#allocation3], 3
    %v1154 = vld [vmem:[%s1153] ss:$8 sm:$0x7]
    %v1155 = vadd.f32 %v1154, %v1111
    %v1156 = vxor.u32 %v1155, 2147483648
    %v1157 = vmul.f32 %v1156, 1.442695
    %v1158 = vpow.pop %v1157
    %v1159 = vadd.f32 %v1158, 1.0
    %v1160 = vrcp.pop %v1159
    %v1161 = vmul.f32 %v1159, %v1160
    %v1162 = vsub.f32 1.0, %v1161
    %v1163 = vmul.f32 %v1160, %v1162
    %v1164 = vadd.f32 %v1160, %v1163
    %vm1165 = vweird.f32 %v1159
    %vm1166 = vweird.f32 %v1160
    %vm1167 = vmor %vm1165, %vm1166
    %v1168 = vsel %vm1167, %v1160, %v1164
    %v1169 = vand.u32 2147483647, %v1159
    %vm1170 = vcmp.eq.f32.partialorder %v1169, 8.507059e+37
    %v1171 = vand.u32 %v1159, 2147483648
    %v1172 = vor.u32 1.1754944e-38, %v1171
    %v1173 = vsel %vm1170, %v1172, %v1168
    %v1174 = vmul.f32 1.0, %v1173
    %v1176 = vrot.slane %v1154, 1
    %v1178 = vadd.f32 %v1176, %v1131
    %v1179 = vxor.u32 %v1178, 2147483648
    %v1180 = vmul.f32 %v1179, 1.442695
    %v1181 = vpow.pop %v1180
    %v1182 = vadd.f32 %v1181, 1.0
    %v1183 = vrcp.pop %v1182
    %v1184 = vmul.f32 %v1182, %v1183
    %v1185 = vsub.f32 1.0, %v1184
    %v1186 = vmul.f32 %v1183, %v1185
    %v1187 = vadd.f32 %v1183, %v1186
    %vm1188 = vweird.f32 %v1182
    %vm1189 = vweird.f32 %v1183
    %vm1190 = vmor %vm1188, %vm1189
    %v1191 = vsel %vm1190, %v1183, %v1187
    %v1192 = vand.u32 2147483647, %v1182
    %vm1193 = vcmp.eq.f32.partialorder %v1192, 8.507059e+37
    %v1194 = vand.u32 %v1182, 2147483648
    %v1195 = vor.u32 1.1754944e-38, %v1194
    %v1196 = vsel %vm1193, %v1195, %v1191
    %v1197 = vmul.f32 1.0, %v1196
    %v1198 = vadd.f32 %v1151, %v741
    %v1199 = vmul.f32 %v1174, %v1198
    %v1200 = vrot.slane %v1154, 2
    %v1202 = vadd.f32 %v1200, %v1199
    %v1203 = vtanh.pop %v1202
    %v1204 = vsub.f32 1.0, %v1197
    %v1205 = vmul.f32 %v1204, %v1203
    %v1206 = vmul.f32 %v1197, %v1090
    %v1207 = vadd.f32 %v1205, %v1206
    %1208 = vst [vmem:[#allocation4 + $0x3] sm:$0x1] %v1207
    %1209 = vst [vmem:[#allocation5 + $0x4] sm:$0x1] %v1207
    %1210 = vmatpush.msra.mxu0 %v738
    %1211 = vmatpush.msra.mxu0 %v735
    %1212 = vmatpush.msra.mxu0 %v732
    %1213 = vmatpush.msra.mxu0 %v729
    %1214 = vmatpush.msra.mxu0 %v726
    %1215 = vmatpush.msra.mxu0 %v723
    %1216 = vmatpush.msra.mxu0 %v720
    %1217 = vmatpush.msra.mxu0 %v717
    %1218 = vmatpush.msra.mxu0 %v714
    %1219 = vmatpush.msra.mxu0 %v711
    %1220 = vmatpush.msra.mxu0 %v708
    %1221 = vmatpush.msra.mxu0 %v705
    %1222 = vmatpush.msra.mxu0 %v702
    %1223 = vmatpush.msra.mxu0 %v699
    %1224 = vmatpush.msra.mxu0 %v696
    %1225 = vmatpush.msra.mxu0 %v693
    %1226 = vmatmul.f32.gmra.mxu0 %v1207
    %v1227 = vpop.f32.mrf.mxu0
    %v1228 = vadd.f32 0.0, %v1227
    %1229 = vdwg.mxu0
    %1230 = vmatpush.msra.mxu0 %v739
    %1231 = vmatpush.msra.mxu0 %v736
    %1232 = vmatpush.msra.mxu0 %v733
    %1233 = vmatpush.msra.mxu0 %v730
    %1234 = vmatpush.msra.mxu0 %v727
    %1235 = vmatpush.msra.mxu0 %v724
    %1236 = vmatpush.msra.mxu0 %v721
    %1237 = vmatpush.msra.mxu0 %v718
    %1238 = vmatpush.msra.mxu0 %v715
    %1239 = vmatpush.msra.mxu0 %v712
    %1240 = vmatpush.msra.mxu0 %v709
    %1241 = vmatpush.msra.mxu0 %v706
    %1242 = vmatpush.msra.mxu0 %v703
    %1243 = vmatpush.msra.mxu0 %v700
    %1244 = vmatpush.msra.mxu0 %v697
    %1245 = vmatpush.msra.mxu0 %v694
    %1246 = vmatmul.f32.gmra.mxu0 %v1207
    %v1247 = vpop.f32.mrf.mxu0
    %v1248 = vadd.f32 0.0, %v1247
    %1249 = vdwg.mxu0
    %1250 = vmatpush.msra.mxu0 %v740
    %1251 = vmatpush.msra.mxu0 %v737
    %1252 = vmatpush.msra.mxu0 %v734
    %1253 = vmatpush.msra.mxu0 %v731
    %1254 = vmatpush.msra.mxu0 %v728
    %1255 = vmatpush.msra.mxu0 %v725
    %1256 = vmatpush.msra.mxu0 %v722
    %1257 = vmatpush.msra.mxu0 %v719
    %1258 = vmatpush.msra.mxu0 %v716
    %1259 = vmatpush.msra.mxu0 %v713
    %1260 = vmatpush.msra.mxu0 %v710
    %1261 = vmatpush.msra.mxu0 %v707
    %1262 = vmatpush.msra.mxu0 %v704
    %1263 = vmatpush.msra.mxu0 %v701
    %1264 = vmatpush.msra.mxu0 %v698
    %1265 = vmatpush.msra.mxu0 %v695
    %1266 = vmatmul.f32.gmra.mxu0 %v1207
    %v1267 = vpop.f32.mrf.mxu0
    %v1268 = vadd.f32 0.0, %v1267
    %1269 = vdwg.mxu0
    %s1270 = scalar_lea.vmem [#allocation3], 4
    %v1271 = vld [vmem:[%s1270] ss:$8 sm:$0x7]
    %v1272 = vadd.f32 %v1271, %v1228
    %v1273 = vxor.u32 %v1272, 2147483648
    %v1274 = vmul.f32 %v1273, 1.442695
    %v1275 = vpow.pop %v1274
    %v1276 = vadd.f32 %v1275, 1.0
    %v1277 = vrcp.pop %v1276
    %v1278 = vmul.f32 %v1276, %v1277
    %v1279 = vsub.f32 1.0, %v1278
    %v1280 = vmul.f32 %v1277, %v1279
    %v1281 = vadd.f32 %v1277, %v1280
    %vm1282 = vweird.f32 %v1276
    %vm1283 = vweird.f32 %v1277
    %vm1284 = vmor %vm1282, %vm1283
    %v1285 = vsel %vm1284, %v1277, %v1281
    %v1286 = vand.u32 2147483647, %v1276
    %vm1287 = vcmp.eq.f32.partialorder %v1286, 8.507059e+37
    %v1288 = vand.u32 %v1276, 2147483648
    %v1289 = vor.u32 1.1754944e-38, %v1288
    %v1290 = vsel %vm1287, %v1289, %v1285
    %v1291 = vmul.f32 1.0, %v1290
    %v1293 = vrot.slane %v1271, 1
    %v1295 = vadd.f32 %v1293, %v1248
    %v1296 = vxor.u32 %v1295, 2147483648
    %v1297 = vmul.f32 %v1296, 1.442695
    %v1298 = vpow.pop %v1297
    %v1299 = vadd.f32 %v1298, 1.0
    %v1300 = vrcp.pop %v1299
    %v1301 = vmul.f32 %v1299, %v1300
    %v1302 = vsub.f32 1.0, %v1301
    %v1303 = vmul.f32 %v1300, %v1302
    %v1304 = vadd.f32 %v1300, %v1303
    %vm1305 = vweird.f32 %v1299
    %vm1306 = vweird.f32 %v1300
    %vm1307 = vmor %vm1305, %vm1306
    %v1308 = vsel %vm1307, %v1300, %v1304
    %v1309 = vand.u32 2147483647, %v1299
    %vm1310 = vcmp.eq.f32.partialorder %v1309, 8.507059e+37
    %v1311 = vand.u32 %v1299, 2147483648
    %v1312 = vor.u32 1.1754944e-38, %v1311
    %v1313 = vsel %vm1310, %v1312, %v1308
    %v1314 = vmul.f32 1.0, %v1313
    %v1315 = vadd.f32 %v1268, %v741
    %v1316 = vmul.f32 %v1291, %v1315
    %v1317 = vrot.slane %v1271, 2
    %v1319 = vadd.f32 %v1317, %v1316
    %v1320 = vtanh.pop %v1319
    %v1321 = vsub.f32 1.0, %v1314
    %v1322 = vmul.f32 %v1321, %v1320
    %v1323 = vmul.f32 %v1314, %v1207
    %v1324 = vadd.f32 %v1322, %v1323
    %1325 = vst [vmem:[#allocation4 + $0x4] sm:$0x1] %v1324
    %1326 = vst [vmem:[#allocation5 + $0x3] sm:$0x1] %v1324
    %1327 = vmatpush.msra.mxu0 %v738
    %1328 = vmatpush.msra.mxu0 %v735
    %1329 = vmatpush.msra.mxu0 %v732
    %1330 = vmatpush.msra.mxu0 %v729
    %1331 = vmatpush.msra.mxu0 %v726
    %1332 = vmatpush.msra.mxu0 %v723
    %1333 = vmatpush.msra.mxu0 %v720
    %1334 = vmatpush.msra.mxu0 %v717
    %1335 = vmatpush.msra.mxu0 %v714
    %1336 = vmatpush.msra.mxu0 %v711
    %1337 = vmatpush.msra.mxu0 %v708
    %1338 = vmatpush.msra.mxu0 %v705
    %1339 = vmatpush.msra.mxu0 %v702
    %1340 = vmatpush.msra.mxu0 %v699
    %1341 = vmatpush.msra.mxu0 %v696
    %1342 = vmatpush.msra.mxu0 %v693
    %1343 = vmatmul.f32.gmra.mxu0 %v1324
    %v1344 = vpop.f32.mrf.mxu0
    %v1345 = vadd.f32 0.0, %v1344
    %1346 = vdwg.mxu0
    %1347 = vmatpush.msra.mxu0 %v739
    %1348 = vmatpush.msra.mxu0 %v736
    %1349 = vmatpush.msra.mxu0 %v733
    %1350 = vmatpush.msra.mxu0 %v730
    %1351 = vmatpush.msra.mxu0 %v727
    %1352 = vmatpush.msra.mxu0 %v724
    %1353 = vmatpush.msra.mxu0 %v721
    %1354 = vmatpush.msra.mxu0 %v718
    %1355 = vmatpush.msra.mxu0 %v715
    %1356 = vmatpush.msra.mxu0 %v712
    %1357 = vmatpush.msra.mxu0 %v709
    %1358 = vmatpush.msra.mxu0 %v706
    %1359 = vmatpush.msra.mxu0 %v703
    %1360 = vmatpush.msra.mxu0 %v700
    %1361 = vmatpush.msra.mxu0 %v697
    %1362 = vmatpush.msra.mxu0 %v694
    %1363 = vmatmul.f32.gmra.mxu0 %v1324
    %v1364 = vpop.f32.mrf.mxu0
    %v1365 = vadd.f32 0.0, %v1364
    %1366 = vdwg.mxu0
    %1367 = vmatpush.msra.mxu0 %v740
    %1368 = vmatpush.msra.mxu0 %v737
    %1369 = vmatpush.msra.mxu0 %v734
    %1370 = vmatpush.msra.mxu0 %v731
    %1371 = vmatpush.msra.mxu0 %v728
    %1372 = vmatpush.msra.mxu0 %v725
    %1373 = vmatpush.msra.mxu0 %v722
    %1374 = vmatpush.msra.mxu0 %v719
    %1375 = vmatpush.msra.mxu0 %v716
    %1376 = vmatpush.msra.mxu0 %v713
    %1377 = vmatpush.msra.mxu0 %v710
    %1378 = vmatpush.msra.mxu0 %v707
    %1379 = vmatpush.msra.mxu0 %v704
    %1380 = vmatpush.msra.mxu0 %v701
    %1381 = vmatpush.msra.mxu0 %v698
    %1382 = vmatpush.msra.mxu0 %v695
    %1383 = vmatmul.f32.gmra.mxu0 %v1324
    %v1384 = vpop.f32.mrf.mxu0
    %v1385 = vadd.f32 0.0, %v1384
    %1386 = vdwg.mxu0
    %s1387 = scalar_lea.vmem [#allocation3], 5
    %v1388 = vld [vmem:[%s1387] ss:$8 sm:$0x7]
    %v1389 = vadd.f32 %v1388, %v1345
    %v1390 = vxor.u32 %v1389, 2147483648
    %v1391 = vmul.f32 %v1390, 1.442695
    %v1392 = vpow.pop %v1391
    %v1393 = vadd.f32 %v1392, 1.0
    %v1394 = vrcp.pop %v1393
    %v1395 = vmul.f32 %v1393, %v1394
    %v1396 = vsub.f32 1.0, %v1395
    %v1397 = vmul.f32 %v1394, %v1396
    %v1398 = vadd.f32 %v1394, %v1397
    %vm1399 = vweird.f32 %v1393
    %vm1400 = vweird.f32 %v1394
    %vm1401 = vmor %vm1399, %vm1400
    %v1402 = vsel %vm1401, %v1394, %v1398
    %v1403 = vand.u32 2147483647, %v1393
    %vm1404 = vcmp.eq.f32.partialorder %v1403, 8.507059e+37
    %v1405 = vand.u32 %v1393, 2147483648
    %v1406 = vor.u32 1.1754944e-38, %v1405
    %v1407 = vsel %vm1404, %v1406, %v1402
    %v1408 = vmul.f32 1.0, %v1407
    %v1410 = vrot.slane %v1388, 1
    %v1412 = vadd.f32 %v1410, %v1365
    %v1413 = vxor.u32 %v1412, 2147483648
    %v1414 = vmul.f32 %v1413, 1.442695
    %v1415 = vpow.pop %v1414
    %v1416 = vadd.f32 %v1415, 1.0
    %v1417 = vrcp.pop %v1416
    %v1418 = vmul.f32 %v1416, %v1417
    %v1419 = vsub.f32 1.0, %v1418
    %v1420 = vmul.f32 %v1417, %v1419
    %v1421 = vadd.f32 %v1417, %v1420
    %vm1422 = vweird.f32 %v1416
    %vm1423 = vweird.f32 %v1417
    %vm1424 = vmor %vm1422, %vm1423
    %v1425 = vsel %vm1424, %v1417, %v1421
    %v1426 = vand.u32 2147483647, %v1416
    %vm1427 = vcmp.eq.f32.partialorder %v1426, 8.507059e+37
    %v1428 = vand.u32 %v1416, 2147483648
    %v1429 = vor.u32 1.1754944e-38, %v1428
    %v1430 = vsel %vm1427, %v1429, %v1425
    %v1431 = vmul.f32 1.0, %v1430
    %v1432 = vadd.f32 %v1385, %v741
    %v1433 = vmul.f32 %v1408, %v1432
    %v1434 = vrot.slane %v1388, 2
    %v1436 = vadd.f32 %v1434, %v1433
    %v1437 = vtanh.pop %v1436
    %v1438 = vsub.f32 1.0, %v1431
    %v1439 = vmul.f32 %v1438, %v1437
    %v1440 = vmul.f32 %v1431, %v1324
    %v1441 = vadd.f32 %v1439, %v1440
    %1442 = vst [vmem:[#allocation4 + $0x5] sm:$0x1] %v1441
    %1443 = vst [vmem:[#allocation5 + $0x2] sm:$0x1] %v1441
    %1444 = vmatpush.msra.mxu0 %v738
    %1445 = vmatpush.msra.mxu0 %v735
    %1446 = vmatpush.msra.mxu0 %v732
    %1447 = vmatpush.msra.mxu0 %v729
    %1448 = vmatpush.msra.mxu0 %v726
    %1449 = vmatpush.msra.mxu0 %v723
    %1450 = vmatpush.msra.mxu0 %v720
    %1451 = vmatpush.msra.mxu0 %v717
    %1452 = vmatpush.msra.mxu0 %v714
    %1453 = vmatpush.msra.mxu0 %v711
    %1454 = vmatpush.msra.mxu0 %v708
    %1455 = vmatpush.msra.mxu0 %v705
    %1456 = vmatpush.msra.mxu0 %v702
    %1457 = vmatpush.msra.mxu0 %v699
    %1458 = vmatpush.msra.mxu0 %v696
    %1459 = vmatpush.msra.mxu0 %v693
    %1460 = vmatmul.f32.gmra.mxu0 %v1441
    %v1461 = vpop.f32.mrf.mxu0
    %v1462 = vadd.f32 0.0, %v1461
    %1463 = vdwg.mxu0
    %1464 = vmatpush.msra.mxu0 %v739
    %1465 = vmatpush.msra.mxu0 %v736
    %1466 = vmatpush.msra.mxu0 %v733
    %1467 = vmatpush.msra.mxu0 %v730
    %1468 = vmatpush.msra.mxu0 %v727
    %1469 = vmatpush.msra.mxu0 %v724
    %1470 = vmatpush.msra.mxu0 %v721
    %1471 = vmatpush.msra.mxu0 %v718
    %1472 = vmatpush.msra.mxu0 %v715
    %1473 = vmatpush.msra.mxu0 %v712
    %1474 = vmatpush.msra.mxu0 %v709
    %1475 = vmatpush.msra.mxu0 %v706
    %1476 = vmatpush.msra.mxu0 %v703
    %1477 = vmatpush.msra.mxu0 %v700
    %1478 = vmatpush.msra.mxu0 %v697
    %1479 = vmatpush.msra.mxu0 %v694
    %1480 = vmatmul.f32.gmra.mxu0 %v1441
    %v1481 = vpop.f32.mrf.mxu0
    %v1482 = vadd.f32 0.0, %v1481
    %1483 = vdwg.mxu0
    %1484 = vmatpush.msra.mxu0 %v740
    %1485 = vmatpush.msra.mxu0 %v737
    %1486 = vmatpush.msra.mxu0 %v734
    %1487 = vmatpush.msra.mxu0 %v731
    %1488 = vmatpush.msra.mxu0 %v728
    %1489 = vmatpush.msra.mxu0 %v725
    %1490 = vmatpush.msra.mxu0 %v722
    %1491 = vmatpush.msra.mxu0 %v719
    %1492 = vmatpush.msra.mxu0 %v716
    %1493 = vmatpush.msra.mxu0 %v713
    %1494 = vmatpush.msra.mxu0 %v710
    %1495 = vmatpush.msra.mxu0 %v707
    %1496 = vmatpush.msra.mxu0 %v704
    %1497 = vmatpush.msra.mxu0 %v701
    %1498 = vmatpush.msra.mxu0 %v698
    %1499 = vmatpush.msra.mxu0 %v695
    %1500 = vmatmul.f32.gmra.mxu0 %v1441
    %v1501 = vpop.f32.mrf.mxu0
    %v1502 = vadd.f32 0.0, %v1501
    %1503 = vdwg.mxu0
    %s1504 = scalar_lea.vmem [#allocation3], 6
    %v1505 = vld [vmem:[%s1504] ss:$8 sm:$0x7]
    %v1506 = vadd.f32 %v1505, %v1462
    %v1507 = vxor.u32 %v1506, 2147483648
    %v1508 = vmul.f32 %v1507, 1.442695
    %v1509 = vpow.pop %v1508
    %v1510 = vadd.f32 %v1509, 1.0
    %v1511 = vrcp.pop %v1510
    %v1512 = vmul.f32 %v1510, %v1511
    %v1513 = vsub.f32 1.0, %v1512
    %v1514 = vmul.f32 %v1511, %v1513
    %v1515 = vadd.f32 %v1511, %v1514
    %vm1516 = vweird.f32 %v1510
    %vm1517 = vweird.f32 %v1511
    %vm1518 = vmor %vm1516, %vm1517
    %v1519 = vsel %vm1518, %v1511, %v1515
    %v1520 = vand.u32 2147483647, %v1510
    %vm1521 = vcmp.eq.f32.partialorder %v1520, 8.507059e+37
    %v1522 = vand.u32 %v1510, 2147483648
    %v1523 = vor.u32 1.1754944e-38, %v1522
    %v1524 = vsel %vm1521, %v1523, %v1519
    %v1525 = vmul.f32 1.0, %v1524
    %v1527 = vrot.slane %v1505, 1
    %v1529 = vadd.f32 %v1527, %v1482
    %v1530 = vxor.u32 %v1529, 2147483648
    %v1531 = vmul.f32 %v1530, 1.442695
    %v1532 = vpow.pop %v1531
    %v1533 = vadd.f32 %v1532, 1.0
    %v1534 = vrcp.pop %v1533
    %v1535 = vmul.f32 %v1533, %v1534
    %v1536 = vsub.f32 1.0, %v1535
    %v1537 = vmul.f32 %v1534, %v1536
    %v1538 = vadd.f32 %v1534, %v1537
    %vm1539 = vweird.f32 %v1533
    %vm1540 = vweird.f32 %v1534
    %vm1541 = vmor %vm1539, %vm1540
    %v1542 = vsel %vm1541, %v1534, %v1538
    %v1543 = vand.u32 2147483647, %v1533
    %vm1544 = vcmp.eq.f32.partialorder %v1543, 8.507059e+37
    %v1545 = vand.u32 %v1533, 2147483648
    %v1546 = vor.u32 1.1754944e-38, %v1545
    %v1547 = vsel %vm1544, %v1546, %v1542
    %v1548 = vmul.f32 1.0, %v1547
    %v1549 = vadd.f32 %v1502, %v741
    %v1550 = vmul.f32 %v1525, %v1549
    %v1551 = vrot.slane %v1505, 2
    %v1553 = vadd.f32 %v1551, %v1550
    %v1554 = vtanh.pop %v1553
    %v1555 = vsub.f32 1.0, %v1548
    %v1556 = vmul.f32 %v1555, %v1554
    %v1557 = vmul.f32 %v1548, %v1441
    %v1558 = vadd.f32 %v1556, %v1557
    %1559 = vst [vmem:[#allocation4 + $0x6] sm:$0x1] %v1558
    %1560 = vst [vmem:[#allocation5 + $0x1] sm:$0x1] %v1558
    %1561 = vmatpush.msra.mxu0 %v738
    %1562 = vmatpush.msra.mxu0 %v735
    %1563 = vmatpush.msra.mxu0 %v732
    %1564 = vmatpush.msra.mxu0 %v729
    %1565 = vmatpush.msra.mxu0 %v726
    %1566 = vmatpush.msra.mxu0 %v723
    %1567 = vmatpush.msra.mxu0 %v720
    %1568 = vmatpush.msra.mxu0 %v717
    %1569 = vmatpush.msra.mxu0 %v714
    %1570 = vmatpush.msra.mxu0 %v711
    %1571 = vmatpush.msra.mxu0 %v708
    %1572 = vmatpush.msra.mxu0 %v705
    %1573 = vmatpush.msra.mxu0 %v702
    %1574 = vmatpush.msra.mxu0 %v699
    %1575 = vmatpush.msra.mxu0 %v696
    %1576 = vmatpush.msra.mxu0 %v693
    %1577 = vmatmul.f32.gmra.mxu0 %v1558
    %v1578 = vpop.f32.mrf.mxu0
    %v1579 = vadd.f32 0.0, %v1578
    %1580 = vdwg.mxu0
    %1581 = vmatpush.msra.mxu0 %v739
    %1582 = vmatpush.msra.mxu0 %v736
    %1583 = vmatpush.msra.mxu0 %v733
    %1584 = vmatpush.msra.mxu0 %v730
    %1585 = vmatpush.msra.mxu0 %v727
    %1586 = vmatpush.msra.mxu0 %v724
    %1587 = vmatpush.msra.mxu0 %v721
    %1588 = vmatpush.msra.mxu0 %v718
    %1589 = vmatpush.msra.mxu0 %v715
    %1590 = vmatpush.msra.mxu0 %v712
    %1591 = vmatpush.msra.mxu0 %v709
    %1592 = vmatpush.msra.mxu0 %v706
    %1593 = vmatpush.msra.mxu0 %v703
    %1594 = vmatpush.msra.mxu0 %v700
    %1595 = vmatpush.msra.mxu0 %v697
    %1596 = vmatpush.msra.mxu0 %v694
    %1597 = vmatmul.f32.gmra.mxu0 %v1558
    %v1598 = vpop.f32.mrf.mxu0
    %v1599 = vadd.f32 0.0, %v1598
    %1600 = vdwg.mxu0
    %1601 = vmatpush.msra.mxu0 %v740
    %1602 = vmatpush.msra.mxu0 %v737
    %1603 = vmatpush.msra.mxu0 %v734
    %1604 = vmatpush.msra.mxu0 %v731
    %1605 = vmatpush.msra.mxu0 %v728
    %1606 = vmatpush.msra.mxu0 %v725
    %1607 = vmatpush.msra.mxu0 %v722
    %1608 = vmatpush.msra.mxu0 %v719
    %1609 = vmatpush.msra.mxu0 %v716
    %1610 = vmatpush.msra.mxu0 %v713
    %1611 = vmatpush.msra.mxu0 %v710
    %1612 = vmatpush.msra.mxu0 %v707
    %1613 = vmatpush.msra.mxu0 %v704
    %1614 = vmatpush.msra.mxu0 %v701
    %1615 = vmatpush.msra.mxu0 %v698
    %1616 = vmatpush.msra.mxu0 %v695
    %1617 = vmatmul.f32.gmra.mxu0 %v1558
    %v1618 = vpop.f32.mrf.mxu0
    %v1619 = vadd.f32 0.0, %v1618
    %1620 = vdwg.mxu0
    %s1621 = scalar_lea.vmem [#allocation3], 7
    %v1622 = vld [vmem:[%s1621] ss:$8 sm:$0x7]
    %v1623 = vadd.f32 %v1622, %v1579
    %v1624 = vxor.u32 %v1623, 2147483648
    %v1625 = vmul.f32 %v1624, 1.442695
    %v1626 = vpow.pop %v1625
    %v1627 = vadd.f32 %v1626, 1.0
    %v1628 = vrcp.pop %v1627
    %v1629 = vmul.f32 %v1627, %v1628
    %v1630 = vsub.f32 1.0, %v1629
    %v1631 = vmul.f32 %v1628, %v1630
    %v1632 = vadd.f32 %v1628, %v1631
    %vm1633 = vweird.f32 %v1627
    %vm1634 = vweird.f32 %v1628
    %vm1635 = vmor %vm1633, %vm1634
    %v1636 = vsel %vm1635, %v1628, %v1632
    %v1637 = vand.u32 2147483647, %v1627
    %vm1638 = vcmp.eq.f32.partialorder %v1637, 8.507059e+37
    %v1639 = vand.u32 %v1627, 2147483648
    %v1640 = vor.u32 1.1754944e-38, %v1639
    %v1641 = vsel %vm1638, %v1640, %v1636
    %v1642 = vmul.f32 1.0, %v1641
    %v1644 = vrot.slane %v1622, 1
    %v1646 = vadd.f32 %v1644, %v1599
    %v1647 = vxor.u32 %v1646, 2147483648
    %v1648 = vmul.f32 %v1647, 1.442695
    %v1649 = vpow.pop %v1648
    %v1650 = vadd.f32 %v1649, 1.0
    %v1651 = vrcp.pop %v1650
    %v1652 = vmul.f32 %v1650, %v1651
    %v1653 = vsub.f32 1.0, %v1652
    %v1654 = vmul.f32 %v1651, %v1653
    %v1655 = vadd.f32 %v1651, %v1654
    %vm1656 = vweird.f32 %v1650
    %vm1657 = vweird.f32 %v1651
    %vm1658 = vmor %vm1656, %vm1657
    %v1659 = vsel %vm1658, %v1651, %v1655
    %v1660 = vand.u32 2147483647, %v1650
    %vm1661 = vcmp.eq.f32.partialorder %v1660, 8.507059e+37
    %v1662 = vand.u32 %v1650, 2147483648
    %v1663 = vor.u32 1.1754944e-38, %v1662
    %v1664 = vsel %vm1661, %v1663, %v1659
    %v1665 = vmul.f32 1.0, %v1664
    %v1666 = vadd.f32 %v1619, %v741
    %v1667 = vmul.f32 %v1642, %v1666
    %v1668 = vrot.slane %v1622, 2
    %v1670 = vadd.f32 %v1668, %v1667
    %v1671 = vtanh.pop %v1670
    %v1672 = vsub.f32 1.0, %v1665
    %v1673 = vmul.f32 %v1672, %v1671
    %v1674 = vmul.f32 %v1665, %v1558
    %v1675 = vadd.f32 %v1673, %v1674
    %1676 = vst [vmem:[#allocation4 + $0x7] sm:$0x1] %v1675
    %1677 = vst [vmem:[#allocation5] sm:$0x1] %v1675
    %vm1678 = vcmask 401408
    %1679 = vst.msk [vmem:[#allocation17] sm:$0x1] %vm1678, %v1675
    %v1681 = vperm.slane %v1675, 0
    %1682 = vrot.lane.b32.xlu0 %v1681, 64
    %v1683 = vpop.permute.xlu0 %1682
    %1685 = vst.msk [vmem:[#allocation17 + $0x1] sm:$0x1] %vm1678, %v1683
    %v1686 = vlaneseq
    %v1687 = vand.u32 %v1686, 127
    %vm1688 = vcmp.lt.s32.totalorder %v1687, 64
    %v1689 = vld [vmem:[#allocation4] sm:$0xff]
    %v1690 = vld [vmem:[#allocation5] sm:$0xff]
    %v1691 = vsel %vm1688, %v1689, %v1690
    %v1692 = vld [vmem:[#allocation14] sm:$0xff]
    %v1693 = vld [vmem:[#allocation14 + $0x8] sm:$0xff]
    %v1694 = vld [vmem:[#allocation14 + $0x10] sm:$0xff]
    %v1695 = vld [vmem:[#allocation14 + $0x18] sm:$0xff]
    %v1696 = vld [vmem:[#allocation14 + $0x20] sm:$0xff]
    %v1697 = vld [vmem:[#allocation14 + $0x28] sm:$0xff]
    %v1698 = vld [vmem:[#allocation14 + $0x30] sm:$0xff]
    %v1699 = vld [vmem:[#allocation14 + $0x38] sm:$0xff]
    %v1700 = vld [vmem:[#allocation14 + $0x40] sm:$0xff]
    %v1701 = vld [vmem:[#allocation14 + $0x48] sm:$0xff]
    %v1702 = vld [vmem:[#allocation14 + $0x50] sm:$0xff]
    %v1703 = vld [vmem:[#allocation14 + $0x58] sm:$0xff]
    %v1704 = vld [vmem:[#allocation14 + $0x60] sm:$0xff]
    %v1705 = vld [vmem:[#allocation14 + $0x68] sm:$0xff]
    %v1706 = vld [vmem:[#allocation14 + $0x70] sm:$0xff]
    %v1707 = vld [vmem:[#allocation14 + $0x78] sm:$0xff]
    %v1708 = vld [vmem:[%s8] sm:$0x1]
    %v1710 = vperm.slane %v1708, 0
    %1712 = vmatpush.msra.mxu0 %v1707
    %1713 = vmatpush.msra.mxu0 %v1706
    %1714 = vmatpush.msra.mxu0 %v1705
    %1715 = vmatpush.msra.mxu0 %v1704
    %1716 = vmatpush.msra.mxu0 %v1703
    %1717 = vmatpush.msra.mxu0 %v1702
    %1718 = vmatpush.msra.mxu0 %v1701
    %1719 = vmatpush.msra.mxu0 %v1700
    %1720 = vmatpush.msra.mxu0 %v1699
    %1721 = vmatpush.msra.mxu0 %v1698
    %1722 = vmatpush.msra.mxu0 %v1697
    %1723 = vmatpush.msra.mxu0 %v1696
    %1724 = vmatpush.msra.mxu0 %v1695
    %1725 = vmatpush.msra.mxu0 %v1694
    %1726 = vmatpush.msra.mxu0 %v1693
    %1727 = vmatpush.msra.mxu0 %v1692
    %1728 = vmatmul.f32.gmra.mxu0 %v1691
    %v1729 = vpop.f32.mrf.mxu0
    %v1730 = vadd.f32 %v1710, %v1729
    %1731 = vdwg.mxu0
    %v1732 = vtanh.pop %v1730
    %v1733 = vld [vmem:[%s9] sm:$0x1]
    %v1735 = vperm.slane %v1733, 0
    %v1737 = vmul.f32 %v1732, %v1735
    %1738 = vadd.xlane.f32.xlu0 %v1737
    %v1739 = vpop.xlane.xlu0 %1738
    %v1740 = vrot.slane %v1739, 4
    %v1741 = vmax.f32 %v1739, %v1740
    %v1742 = vrot.slane %v1741, 2
    %v1743 = vmax.f32 %v1741, %v1742
    %v1744 = vrot.slane %v1743, 1
    %v1745 = vmax.f32 %v1743, %v1744
    %v1746 = vsub.f32 %v1739, %v1745
    %v1747 = vmul.f32 %v1746, 1.442695
    %v1748 = vpow.pop %v1747
    %v1749 = vrot.slane %v1748, 4
    %v1750 = vadd.f32 %v1748, %v1749
    %v1751 = vrot.slane %v1750, 2
    %v1752 = vadd.f32 %v1750, %v1751
    %v1753 = vrot.slane %v1752, 1
    %v1754 = vadd.f32 %v1752, %v1753
    %v1755 = vrcp.pop %v1754
    %v1756 = vmul.f32 %v1754, %v1755
    %v1757 = vsub.f32 1.0, %v1756
    %v1758 = vmul.f32 %v1755, %v1757
    %v1759 = vadd.f32 %v1755, %v1758
    %vm1760 = vweird.f32 %v1754
    %vm1761 = vweird.f32 %v1755
    %vm1762 = vmor %vm1760, %vm1761
    %v1763 = vsel %vm1762, %v1755, %v1759
    %v1764 = vand.u32 2147483647, %v1754
    %vm1765 = vcmp.eq.f32.partialorder %v1764, 8.507059e+37
    %v1766 = vand.u32 %v1754, 2147483648
    %v1767 = vor.u32 1.1754944e-38, %v1766
    %v1768 = vsel %vm1765, %v1767, %v1763
    %v1769 = vmul.f32 %v1748, %v1768
    %v1770 = vmul.f32 %v1769, %v1691
    %v1771 = vrot.slane %v1770, 4
    %v1772 = vadd.f32 %v1770, %v1771
    %v1773 = vrot.slane %v1772, 2
    %v1774 = vadd.f32 %v1772, %v1773
    %v1775 = vrot.slane %v1774, 1
    %v1776 = vadd.f32 %v1774, %v1775
    %1777 = vst.msk [vmem:[#allocation16] sm:$0x1] %vm1678, %v1776
    %1779 = vrot.lane.b32.xlu0 %v1776, 114
    %v1780 = vpop.permute.xlu0 %1779
    %vm1782 = vcmask 811408
    %1783 = vst.msk [vmem:[#allocation16] sm:$0x1] %vm1782, %v1780
    // Predicated region
    $region62: #{han_word_encoder.1} parent=1 // pred_check
      _
    $region63: #{han_word_encoder.1} parent=1 // pred_check_branch
      %1785 = sbr.rel (0) target = $region65
    $region64: #{han_word_encoder.1} parent=1 // pred_region
      %1787 = vsyncadd [#allocation8], 0
      %s1789 = sshll.u32 [#allocation16], 4
      %s1790 = int_to_ptr.vmem [resolvable:$true] %s1789
      %s1791 = sshll.u32 %s10, 4
      %s1792 = int_to_ptr.hbm [resolvable:$true] %s1791
      %1794 = dma.vmem_to_hbm [thread:$0]  %s1790, 16, %s1792, [#allocation8]
    $region65: #{han_word_encoder.1} parent=1 // pred_fallthru
      _
    // Predicated region
    $region66: #{han_word_encoder.1} parent=1 // pred_check
      _
    $region67: #{han_word_encoder.1} parent=1 // pred_check_branch
      %1796 = sbr.rel (0) target = $region69
    $region68: #{han_word_encoder.1} parent=1 // pred_region
      %1798 = vsyncadd [#allocation18], 0
      %s1800 = sshll.u32 [#allocation17], 4
      %s1801 = int_to_ptr.vmem [resolvable:$true] %s1800
      %s1802 = sshll.u32 %s11, 4
      %s1803 = int_to_ptr.hbm [resolvable:$true] %s1802
      %1805 = dma.vmem_to_hbm [thread:$0]  %s1801, 32, %s1803, [#allocation18]
    $region69: #{han_word_encoder.1} parent=1 // pred_fallthru
      _
    // Predicated region
    $region70: #{han_word_encoder.1} parent=1 // pred_check
      _
    $region71: #{han_word_encoder.1} parent=1 // pred_check_branch
      %1807 = sbr.rel (0) target = $region73
    $region72: #{han_word_encoder.1} parent=1 // pred_region
      %1809 = dma.done [#allocation8], 16
    $region73: #{han_word_encoder.1} parent=1 // pred_fallthru
      _
    // Predicated region
    $region74: #{han_word_encoder.1} parent=1 // pred_check
      _
    $region75: #{han_word_encoder.1} parent=1 // pred_check_branch
      %1811 = sbr.rel (0) target = $region77
    $region76: #{han_word_encoder.1} parent=1 // pred_region
      %1813 = dma.done [#allocation18], 32
    $region77: #{han_word_encoder.1} parent=1 // pred_fallthru
      _
    %1814 = vsyncpa [#allocation7], 1
    %1815 = vsyncpa [#allocation12], 1
    %1816 = vsyncpa [#allocation15], 1
    %1817 = vsyncpa [#allocation8], 1
    %1818 = vsyncpa [#allocation18], 1
    %1819 = vsyncpa [#allocation9], 1

</llo_original>
